<compile_context>
chip_gen: v5e
topology: v5e:2x2
jax: 0.10.0
libtpu: 0.0.40
codegen_flags: <defaults>
</compile_context>

<pallas_src>
import math

import jax
import jax.numpy as jnp
from jax.experimental import pallas as pl
from jax.experimental.pallas import tpu as pltpu

HIDDEN = 600
LANE = 128  # TPU lane width: hidden and output dims are padded to multiples of this.


def snakenet_kernel(x_ref, w1_ref, b1_ref, w2_ref, b2_ref, w3_ref, b3_ref, o_ref):
    # One batch tile per grid step. x and weights are bf16 (MXU-native), biases f32,
    # accumulation in f32. Weights use constant index_maps -> VMEM-resident.
    x = x_ref[...]  # already bf16 (cast in wrapper)
    h1 = jnp.dot(x, w1_ref[...], preferred_element_type=jnp.float32) + b1_ref[...]
    h1 = jnp.maximum(h1, 0.0).astype(jnp.bfloat16)
    h2 = jnp.dot(h1, w2_ref[...], preferred_element_type=jnp.float32) + b2_ref[...]
    h2 = jnp.maximum(h2, 0.0).astype(jnp.bfloat16)
    out = jnp.dot(h2, w3_ref[...], preferred_element_type=jnp.float32) + b3_ref[...]
    o_ref[...] = out.astype(o_ref.dtype)


def snakenet_forward(x, kernel_params, output_size, *, tile_m=512):
    """x: (B, input_size) f32 (or bf16). kernel_params from prepare_params()."""
    w1, b1, w2, b2, w3p, b3p = kernel_params
    B, in_size = x.shape
    out_pad = w3p.shape[1]

    # Batch tile: up to tile_m rows, sublane-aligned (multiple of 8), never larger than
    # the array (so only the *last* grid tile can be partial -> masked OOB writes).
    if B < 8:
        tm = B  # block dim equals the full array dim -> allowed by the (8,128) rule
    else:
        tm = min(tile_m, (B // 8) * 8)
    grid = pl.cdiv(B, tm)

    x = x.astype(jnp.bfloat16)  # halve the per-tile input DMA

    def resident(shape):
        # Full-array block with a constant index_map: loaded to VMEM once (per TC on
        # v7x) and reused across every batch tile.
        n = len(shape)
        return pl.BlockSpec(shape, lambda i: (0,) * n)

    out = pl.pallas_call(
        snakenet_kernel,
        out_shape=jax.ShapeDtypeStruct((B, out_pad), jnp.float32),
        grid=(grid,),
        in_specs=[
            pl.BlockSpec((tm, in_size), lambda i: (i, 0)),
            resident(w1.shape), resident(b1.shape),
            resident(w2.shape), resident(b2.shape),
            resident(w3p.shape), resident(b3p.shape),
        ],
        out_specs=pl.BlockSpec((tm, out_pad), lambda i: (i, 0)),
        compiler_params=pltpu.CompilerParams(
            dimension_semantics=("parallel",),    # shard batch tiles across TCs (v7x)
            vmem_limit_bytes=32 * 1024 * 1024,    # ~5-6 MiB working set at tm=512
        ),
    )(x, w1, b1, w2, b2, w3p, b3p)

    return out[:, :output_size]


def init_params(key, input_size, output_size):
    """Deterministic f32 init mimicking torch.nn.Linear (uniform +-1/sqrt(fan_in)).

    Weights returned as (in_features, out_features); biases as (1, out_features).
    """
    keys = jax.random.split(key, 6)

    def linear(kw, kb, fan_in, fan_out):
        bound = 1.0 / math.sqrt(fan_in)
        w = jax.random.uniform(kw, (fan_in, fan_out), jnp.float32, -bound, bound)
        b = jax.random.uniform(kb, (1, fan_out), jnp.float32, -bound, bound)
        return w, b

    w1, b1 = linear(keys[0], keys[1], input_size, HIDDEN)
    w2, b2 = linear(keys[2], keys[3], HIDDEN, HIDDEN)
    w3, b3 = linear(keys[4], keys[5], HIDDEN, output_size)
    return (w1, b1, w2, b2, w3, b3)


def prepare_params(params):
    """Cast weights to bf16; zero-pad hidden dims to 640 and the output dim to 128.

    Zero padding is exact: padded h1/h2 columns are relu(0+0)=0 and multiply zero
    weight rows, so they contribute nothing to the real outputs.
    """
    w1, b1, w2, b2, w3, b3 = params
    hid = w1.shape[1]
    out_size = w3.shape[1]
    hid_pad = LANE * pl.cdiv(hid, LANE)       # 600 -> 640
    out_pad = LANE * pl.cdiv(out_size, LANE)  # 4   -> 128
    dh = hid_pad - hid
    do = out_pad - out_size

    w1p = jnp.pad(w1, ((0, 0), (0, dh)))
    b1p = jnp.pad(b1, ((0, 0), (0, dh)))
    w2p = jnp.pad(w2, ((0, dh), (0, dh)))
    b2p = jnp.pad(b2, ((0, 0), (0, dh)))
    w3p = jnp.pad(w3, ((0, dh), (0, do)))
    b3p = jnp.pad(b3, ((0, 0), (0, do)))
    return (
        w1p.astype(jnp.bfloat16), b1p.astype(jnp.float32),
        w2p.astype(jnp.bfloat16), b2p.astype(jnp.float32),
        w3p.astype(jnp.bfloat16), b3p.astype(jnp.float32),
    )


def reference_forward(x, params):
    """Pure-JAX reference matching the kernel's bf16-weight / f32-accumulate numerics."""
    w1, b1, w2, b2, w3, b3 = params

    def bf(a):  # round to bf16, compute in f32 (bf16 products are exact in f32)
        return a.astype(jnp.bfloat16).astype(jnp.float32)

    h1 = jnp.maximum(bf(x) @ bf(w1) + b1, 0.0)
    h2 = jnp.maximum(bf(h1) @ bf(w2) + b2, 0.0)
    return bf(h2) @ bf(w3) + b3


if __name__ == "__main__":
    key = jax.random.PRNGKey(0)
    k_x, k_x2, k_p = jax.random.split(key, 3)

    batch = 2
    input_size = 32   # e.g. flattened game-state features
    output_size = 4   # e.g. 4 snake moves

    params = init_params(k_p, input_size, output_size)
    kparams = prepare_params(params)

    # Tiny batch (single full block).
    x = jax.random.normal(k_x, (batch, input_size), jnp.float32)
    out = jax.block_until_ready(snakenet_forward(x, kparams, output_size))
    ref = reference_forward(x, params)
    assert out.shape == (batch, output_size)
    assert jnp.allclose(out, ref, atol=1e-2, rtol=1e-2), float(jnp.max(jnp.abs(out - ref)))

    # Batch that exercises the partial (masked) last grid tile, still small.
    batch2 = 20
    x2 = jax.random.normal(k_x2, (batch2, input_size), jnp.float32)
    out2 = jax.block_until_ready(snakenet_forward(x2, kparams, output_size))
    ref2 = reference_forward(x2, params)
    assert out2.shape == (batch2, output_size)
    assert jnp.allclose(out2, ref2, atol=1e-2, rtol=1e-2), float(jnp.max(jnp.abs(out2 - ref2)))

    print("KERNEL_OK")
</pallas_src>

<mosaic_0001>
module attributes {stable_mosaic.version = 11 : i64} {
  func.func @snakenet_kernel(%arg0: i32, %arg1: memref<2x32xbf16, #tpu.memory_space<vmem>>, %arg2: memref<32x640xbf16, #tpu.memory_space<vmem>>, %arg3: memref<1x640xf32, #tpu.memory_space<vmem>>, %arg4: memref<640x640xbf16, #tpu.memory_space<vmem>>, %arg5: memref<1x640xf32, #tpu.memory_space<vmem>>, %arg6: memref<640x128xbf16, #tpu.memory_space<vmem>>, %arg7: memref<1x128xf32, #tpu.memory_space<vmem>>, %arg8: memref<2x128xf32, #tpu.memory_space<vmem>>) attributes {dimension_semantics = [#tpu.dimension_semantics<parallel>], iteration_bounds = array<i64: 1>, scalar_prefetch = 0 : i64, scratch_operands = 0 : i64, tpu.core_type = #tpu.core_type<tc>, window_params = [{transform_indices = @transform_0, window_bounds = array<i64: 2, 32>}, {pipeline_mode = #tpu.pipeline_mode<synchronous>, transform_indices = @transform_1, window_bounds = array<i64: 32, 640>}, {pipeline_mode = #tpu.pipeline_mode<synchronous>, transform_indices = @transform_2, window_bounds = array<i64: 1, 640>}, {pipeline_mode = #tpu.pipeline_mode<synchronous>, transform_indices = @transform_3, window_bounds = array<i64: 640, 640>}, {pipeline_mode = #tpu.pipeline_mode<synchronous>, transform_indices = @transform_4, window_bounds = array<i64: 1, 640>}, {pipeline_mode = #tpu.pipeline_mode<synchronous>, transform_indices = @transform_5, window_bounds = array<i64: 640, 128>}, {pipeline_mode = #tpu.pipeline_mode<synchronous>, transform_indices = @transform_6, window_bounds = array<i64: 1, 128>}, {transform_indices = @transform_7, window_bounds = array<i64: 2, 128>}]} {
    %c0 = arith.constant 0 : index
    %c0_0 = arith.constant 0 : index
    %0 = vector.load %arg1[%c0, %c0_0] : memref<2x32xbf16, #tpu.memory_space<vmem>>, vector<2x32xbf16>
    %c0_1 = arith.constant 0 : index
    %c0_2 = arith.constant 0 : index
    %1 = vector.load %arg2[%c0_1, %c0_2] : memref<32x640xbf16, #tpu.memory_space<vmem>>, vector<32x640xbf16>
    %cst = arith.constant dense<0.000000e+00> : vector<2x640xf32>
    %2 = tpu.matmul %0, %1, %cst {dimension_numbers = #tpu.dot_dimension_numbers<[1], [0], [0], [1], [0, 0, 1, 1], [], []>} : vector<2x32xbf16>, vector<32x640xbf16>, vector<2x640xf32> -> vector<2x640xf32>
    %c0_3 = arith.constant 0 : index
    %c0_4 = arith.constant 0 : index
    %3 = vector.load %arg3[%c0_3, %c0_4] : memref<1x640xf32, #tpu.memory_space<vmem>>, vector<1x640xf32>
    %4 = vector.broadcast %3 : vector<1x640xf32> to vector<2x640xf32>
    %5 = arith.addf %2, %4 : vector<2x640xf32>
    %cst_5 = arith.constant 0.000000e+00 : f32
    %6 = vector.broadcast %cst_5 : f32 to vector<2x640xf32>
    %7 = arith.maximumf %5, %6 : vector<2x640xf32>
    %8 = arith.truncf %7 : vector<2x640xf32> to vector<2x640xbf16>
    %c0_6 = arith.constant 0 : index
    %c0_7 = arith.constant 0 : index
    %9 = vector.load %arg4[%c0_6, %c0_7] : memref<640x640xbf16, #tpu.memory_space<vmem>>, vector<640x640xbf16>
    %cst_8 = arith.constant dense<0.000000e+00> : vector<2x640xf32>
    %10 = tpu.matmul %8, %9, %cst_8 {dimension_numbers = #tpu.dot_dimension_numbers<[1], [0], [0], [1], [0, 0, 1, 1], [], []>} : vector<2x640xbf16>, vector<640x640xbf16>, vector<2x640xf32> -> vector<2x640xf32>
    %c0_9 = arith.constant 0 : index
    %c0_10 = arith.constant 0 : index
    %11 = vector.load %arg5[%c0_9, %c0_10] : memref<1x640xf32, #tpu.memory_space<vmem>>, vector<1x640xf32>
    %12 = vector.broadcast %11 : vector<1x640xf32> to vector<2x640xf32>
    %13 = arith.addf %10, %12 : vector<2x640xf32>
    %cst_11 = arith.constant 0.000000e+00 : f32
    %14 = vector.broadcast %cst_11 : f32 to vector<2x640xf32>
    %15 = arith.maximumf %13, %14 : vector<2x640xf32>
    %16 = arith.truncf %15 : vector<2x640xf32> to vector<2x640xbf16>
    %c0_12 = arith.constant 0 : index
    %c0_13 = arith.constant 0 : index
    %17 = vector.load %arg6[%c0_12, %c0_13] : memref<640x128xbf16, #tpu.memory_space<vmem>>, vector<640x128xbf16>
    %cst_14 = arith.constant dense<0.000000e+00> : vector<2x128xf32>
    %18 = tpu.matmul %16, %17, %cst_14 {dimension_numbers = #tpu.dot_dimension_numbers<[1], [0], [0], [1], [0, 0, 1, 1], [], []>} : vector<2x640xbf16>, vector<640x128xbf16>, vector<2x128xf32> -> vector<2x128xf32>
    %c0_15 = arith.constant 0 : index
    %c0_16 = arith.constant 0 : index
    %19 = vector.load %arg7[%c0_15, %c0_16] : memref<1x128xf32, #tpu.memory_space<vmem>>, vector<1x128xf32>
    %20 = vector.broadcast %19 : vector<1x128xf32> to vector<2x128xf32>
    %21 = arith.addf %18, %20 : vector<2x128xf32>
    %c0_17 = arith.constant 0 : index
    %c0_18 = arith.constant 0 : index
    %22 = vector.load %arg8[%c0_17, %c0_18] : memref<2x128xf32, #tpu.memory_space<vmem>>, vector<2x128xf32>
    tpu.vector_store %arg8[%c0_17, %c0_18], %21 {strides = array<i32>} : memref<2x128xf32, #tpu.memory_space<vmem>>, vector<2x128xf32>,
    return
  }
  func.func @transform_0(%arg0: i32) -> (i32, i32) {
    %c0_i32 = arith.constant 0 : i32
    %c0_i32_0 = arith.constant 0 : i32
    return %arg0, %c0_i32 : i32, i32
  }
  func.func @transform_1(%arg0: i32) -> (i32, i32) {
    %c0_i32 = arith.constant 0 : i32
    %c0_i32_0 = arith.constant 0 : i32
    %c0_i32_1 = arith.constant 0 : i32
    return %c0_i32, %c0_i32_0 : i32, i32
  }
  func.func @transform_2(%arg0: i32) -> (i32, i32) {
    %c0_i32 = arith.constant 0 : i32
    %c0_i32_0 = arith.constant 0 : i32
    %c0_i32_1 = arith.constant 0 : i32
    return %c0_i32, %c0_i32_0 : i32, i32
  }
  func.func @transform_3(%arg0: i32) -> (i32, i32) {
    %c0_i32 = arith.constant 0 : i32
    %c0_i32_0 = arith.constant 0 : i32
    %c0_i32_1 = arith.constant 0 : i32
    return %c0_i32, %c0_i32_0 : i32, i32
  }
  func.func @transform_4(%arg0: i32) -> (i32, i32) {
    %c0_i32 = arith.constant 0 : i32
    %c0_i32_0 = arith.constant 0 : i32
    %c0_i32_1 = arith.constant 0 : i32
    return %c0_i32, %c0_i32_0 : i32, i32
  }
  func.func @transform_5(%arg0: i32) -> (i32, i32) {
    %c0_i32 = arith.constant 0 : i32
    %c0_i32_0 = arith.constant 0 : i32
    %c0_i32_1 = arith.constant 0 : i32
    return %c0_i32, %c0_i32_0 : i32, i32
  }
  func.func @transform_6(%arg0: i32) -> (i32, i32) {
    %c0_i32 = arith.constant 0 : i32
    %c0_i32_0 = arith.constant 0 : i32
    %c0_i32_1 = arith.constant 0 : i32
    return %c0_i32, %c0_i32_0 : i32, i32
  }
  func.func @transform_7(%arg0: i32) -> (i32, i32) {
    %c0_i32 = arith.constant 0 : i32
    %c0_i32_0 = arith.constant 0 : i32
    return %arg0, %c0_i32 : i32, i32
  }
}

</mosaic_0001>

<llo_original>
// kernel: tpu_custom_call.1
$region0: #{tpu_custom_call.1}
  #allocation0 [shape = 'u32[]', space=smem, size = 0x4, offset = 0x4, fixed_abs, tag = 'smem constant byte address 0x4 - core index']
  #allocation1 [shape = 'u32[72,128]{1,0:T(1,128)}', space=vmem, size = 0x9000, scoped, tag = 'internal scratch']
  %s0 = inlined_call_operand.hbm [shape: bf16[2,32], index: 0, kind: input, shape index: {}]
  %s1 = inlined_call_operand.hbm [shape: bf16[32,640], index: 1, kind: input, shape index: {}]
  %s2 = inlined_call_operand.hbm [shape: f32[1,640], index: 2, kind: input, shape index: {}]
  %s3 = inlined_call_operand.hbm [shape: bf16[640,640], index: 3, kind: input, shape index: {}]
  %s4 = inlined_call_operand.hbm [shape: f32[1,640], index: 4, kind: input, shape index: {}]
  %s5 = inlined_call_operand.hbm [shape: bf16[640,128], index: 5, kind: input, shape index: {}]
  %s6 = inlined_call_operand.vmem [shape: f32[1,128], index: 6, kind: input, shape index: {}]
  %s7 = inlined_call_operand.hbm [shape: f32[2,128], index: 7, kind: output, shape index: {}]
  %s8 = sld [smem:[#allocation0]]
  $region62: #{tpu_custom_call.1} parent=0
    _
  %s10 = ssub.s32 1, %s8
  %s11 = scalar_select 0, %s10, %s8
  $region1: #{tpu_custom_call.1} parent=0
    #allocation2 [shape = 'u8[512]{0}', space=vmem, size = 0x400, scoped, tag = 'input window, operand 0, single buffered']
    #allocation3 [shape = 's32[1]{0}', space=sflag, size = 0x4, scoped, tag = 'scoped memory for tpu_custom_call.1']
    #allocation4 [shape = 's32[1]{0}', space=sflag, size = 0x4, scoped, tag = 'scoped memory for tpu_custom_call.1']
    #allocation5 [shape = 'u8[40960]{0}', space=vmem, size = 0xa000, scoped, tag = 'input window, operand 1, single buffered']
    #allocation6 [shape = 's32[1]{0}', space=sflag, size = 0x4, scoped, tag = 'scoped memory for tpu_custom_call.1']
    #allocation7 [shape = 'u8[2560]{0}', space=vmem, size = 0xc00, scoped, tag = 'input window, operand 2, single buffered']
    #allocation8 [shape = 'u8[819200]{0}', space=vmem, size = 0xc8000, scoped, tag = 'input window, operand 3, single buffered']
    #allocation9 [shape = 's32[1]{0}', space=sflag, size = 0x4, scoped, tag = 'scoped memory for tpu_custom_call.1']
    #allocation10 [shape = 'u8[2560]{0}', space=vmem, size = 0xc00, scoped, tag = 'input window, operand 4, single buffered']
    #allocation11 [shape = 'u8[163840]{0}', space=vmem, size = 0x28000, scoped, tag = 'input window, operand 5, single buffered']
    #allocation12 [shape = 's32[1]{0}', space=sflag, size = 0x4, scoped, tag = 'scoped memory for tpu_custom_call.1']
    #allocation13 [shape = 'u8[1024]{0}', space=vmem, size = 0x400, scoped, tag = 'output window, operand 0, single buffered']
    %12 = vsyncpa [#allocation3], 0
    %13 = vsyncpa [#allocation6], 0
    %14 = vsyncpa [#allocation9], 0
    %15 = vsyncpa [#allocation12], 0
    %16 = vsyncpa [#allocation4], 0
    // Predicated region
    $region2: #{tpu_custom_call.1} parent=1 // pred_check
      _
    $region3: #{tpu_custom_call.1} parent=1 // pred_check_branch
      %18 = sbr.rel (0) target = $region5
    $region4: #{tpu_custom_call.1} parent=1 // pred_region
      %20 = vsyncadd [#allocation3], 0
      %s22 = sshll.u32 %s0, 4
      %s23 = int_to_ptr.hbm [resolvable:$true] %s22
      %s24 = sshll.u32 [#allocation2], 4
      %s25 = int_to_ptr.vmem [resolvable:$true] %s24
      %27 = dma.hbm_to_vmem [thread:$0]  %s23, 16, %s25, [#allocation3]
    $region5: #{tpu_custom_call.1} parent=1 // pred_fallthru
      _
    // Predicated region
    $region6: #{tpu_custom_call.1} parent=1 // pred_check
      _
    $region7: #{tpu_custom_call.1} parent=1 // pred_check_branch
      %29 = sbr.rel (0) target = $region9
    $region8: #{tpu_custom_call.1} parent=1 // pred_region
      %31 = vsyncadd [#allocation6], 0
      %s32 = sshll.u32 %s1, 4
      %s33 = int_to_ptr.hbm [resolvable:$true] %s32
      %s34 = sshll.u32 [#allocation5], 4
      %s35 = int_to_ptr.vmem [resolvable:$true] %s34
      %40 = dma.hbm_to_vmem [thread:$0]  %s33, 1280, %s35, [#allocation6], 320, 320, 20
    $region9: #{tpu_custom_call.1} parent=1 // pred_fallthru
      _
    // Predicated region
    $region10: #{tpu_custom_call.1} parent=1 // pred_check
      _
    $region11: #{tpu_custom_call.1} parent=1 // pred_check_branch
      %42 = sbr.rel (0) target = $region13
    $region12: #{tpu_custom_call.1} parent=1 // pred_region
      %44 = vsyncadd [#allocation6], 0
      %s46 = sshll.u32 %s2, 4
      %s47 = int_to_ptr.hbm [resolvable:$true] %s46
      %s48 = sshll.u32 [#allocation7], 4
      %s49 = int_to_ptr.vmem [resolvable:$true] %s48
      %51 = dma.hbm_to_vmem [thread:$0]  %s47, 80, %s49, [#allocation6]
    $region13: #{tpu_custom_call.1} parent=1 // pred_fallthru
      _
    // Predicated region
    $region14: #{tpu_custom_call.1} parent=1 // pred_check
      _
    $region15: #{tpu_custom_call.1} parent=1 // pred_check_branch
      %53 = sbr.rel (0) target = $region17
    $region16: #{tpu_custom_call.1} parent=1 // pred_region
      %55 = vsyncadd [#allocation9], 0
      %s56 = sshll.u32 %s3, 4
      %s57 = int_to_ptr.hbm [resolvable:$true] %s56
      %s58 = sshll.u32 [#allocation8], 4
      %s59 = int_to_ptr.vmem [resolvable:$true] %s58
      %64 = dma.hbm_to_vmem [thread:$0]  %s57, 25600, %s59, [#allocation9], 320, 320, 20
    $region17: #{tpu_custom_call.1} parent=1 // pred_fallthru
      _
    // Predicated region
    $region18: #{tpu_custom_call.1} parent=1 // pred_check
      _
    $region19: #{tpu_custom_call.1} parent=1 // pred_check_branch
      %66 = sbr.rel (0) target = $region21
    $region20: #{tpu_custom_call.1} parent=1 // pred_region
      %68 = vsyncadd [#allocation9], 0
      %s70 = sshll.u32 %s4, 4
      %s71 = int_to_ptr.hbm [resolvable:$true] %s70
      %s72 = sshll.u32 [#allocation10], 4
      %s73 = int_to_ptr.vmem [resolvable:$true] %s72
      %75 = dma.hbm_to_vmem [thread:$0]  %s71, 80, %s73, [#allocation9]
    $region21: #{tpu_custom_call.1} parent=1 // pred_fallthru
      _
    // Predicated region
    $region22: #{tpu_custom_call.1} parent=1 // pred_check
      _
    $region23: #{tpu_custom_call.1} parent=1 // pred_check_branch
      %77 = sbr.rel (0) target = $region25
    $region24: #{tpu_custom_call.1} parent=1 // pred_region
      %79 = vsyncadd [#allocation12], 0
      %s80 = sshll.u32 %s5, 4
      %s81 = int_to_ptr.hbm [resolvable:$true] %s80
      %s82 = sshll.u32 [#allocation11], 4
      %s83 = int_to_ptr.vmem [resolvable:$true] %s82
      %88 = dma.hbm_to_vmem [thread:$0]  %s81, 5120, %s83, [#allocation12], 64, 64, 4
    $region25: #{tpu_custom_call.1} parent=1 // pred_fallthru
      _
    // Predicated region
    $region26: #{tpu_custom_call.1} parent=1 // pred_check
      _
    $region27: #{tpu_custom_call.1} parent=1 // pred_check_branch
      %90 = sbr.rel (0) target = $region29
    $region28: #{tpu_custom_call.1} parent=1 // pred_region
      _
    $region29: #{tpu_custom_call.1} parent=1 // pred_fallthru
      _
    // Predicated region
    $region30: #{tpu_custom_call.1} parent=1 // pred_check
      _
    $region31: #{tpu_custom_call.1} parent=1 // pred_check_branch
      %92 = sbr.rel (0) target = $region33
    $region32: #{tpu_custom_call.1} parent=1 // pred_region
      %94 = dma.done [#allocation3], 16
    $region33: #{tpu_custom_call.1} parent=1 // pred_fallthru
      _
    // Predicated region
    $region34: #{tpu_custom_call.1} parent=1 // pred_check
      _
    $region35: #{tpu_custom_call.1} parent=1 // pred_check_branch
      %96 = sbr.rel (0) target = $region37
    $region36: #{tpu_custom_call.1} parent=1 // pred_region
      %98 = dma.done [#allocation6], 1280
    $region37: #{tpu_custom_call.1} parent=1 // pred_fallthru
      _
    // Predicated region
    $region38: #{tpu_custom_call.1} parent=1 // pred_check
      _
    $region39: #{tpu_custom_call.1} parent=1 // pred_check_branch
      %100 = sbr.rel (0) target = $region41
    $region40: #{tpu_custom_call.1} parent=1 // pred_region
      %102 = dma.done [#allocation6], 80
    $region41: #{tpu_custom_call.1} parent=1 // pred_fallthru
      _
    // Predicated region
    $region42: #{tpu_custom_call.1} parent=1 // pred_check
      _
    $region43: #{tpu_custom_call.1} parent=1 // pred_check_branch
      %104 = sbr.rel (0) target = $region45
    $region44: #{tpu_custom_call.1} parent=1 // pred_region
      %106 = dma.done [#allocation9], 25600
    $region45: #{tpu_custom_call.1} parent=1 // pred_fallthru
      _
    // Predicated region
    $region46: #{tpu_custom_call.1} parent=1 // pred_check
      _
    $region47: #{tpu_custom_call.1} parent=1 // pred_check_branch
      %108 = sbr.rel (0) target = $region49
    $region48: #{tpu_custom_call.1} parent=1 // pred_region
      %110 = dma.done [#allocation9], 80
    $region49: #{tpu_custom_call.1} parent=1 // pred_fallthru
      _
    // Predicated region
    $region50: #{tpu_custom_call.1} parent=1 // pred_check
      _
    $region51: #{tpu_custom_call.1} parent=1 // pred_check_branch
      %112 = sbr.rel (0) target = $region53
    $region52: #{tpu_custom_call.1} parent=1 // pred_region
      %114 = dma.done [#allocation12], 5120
    $region53: #{tpu_custom_call.1} parent=1 // pred_fallthru
      _
    %v116 = vld [vmem:[#allocation2] sm:$0x1]
    %v117 = vld [vmem:[#allocation5] sm:$0xff]
    %v118 = vld [vmem:[#allocation5 + $0x8] sm:$0xff]
    %v119 = vld [vmem:[#allocation5 + $0x10] sm:$0xf]
    %v120 = vld [vmem:[#allocation5 + $0x14] sm:$0xff]
    %v121 = vld [vmem:[#allocation5 + $0x1c] sm:$0xff]
    %v122 = vld [vmem:[#allocation5 + $0x24] sm:$0xf]
    %v123 = vld [vmem:[#allocation5 + $0x28] sm:$0xff]
    %v124 = vld [vmem:[#allocation5 + $0x30] sm:$0xff]
    %v125 = vld [vmem:[#allocation5 + $0x38] sm:$0xf]
    %v126 = vld [vmem:[#allocation5 + $0x3c] sm:$0xff]
    %v127 = vld [vmem:[#allocation5 + $0x44] sm:$0xff]
    %v128 = vld [vmem:[#allocation5 + $0x4c] sm:$0xf]
    %v129 = vld [vmem:[#allocation7] sm:$0x1f]
    %v131 = vperm.slane %v129, 0
    %v132 = vperm.slane %v129, 1
    %v133 = vperm.slane %v129, 2
    %v134 = vperm.slane %v129, 3
    %v135 = vperm.slane %v129, 4
    %v153 = vunpack.c.l.b16 %v117
    %v154 = vunpack.c.h.b16 %v117
    %v155 = vunpack.c.l.b16 %v118
    %v156 = vunpack.c.h.b16 %v118
    %v157 = vunpack.c.l.b16 %v119
    %v158 = vunpack.c.l.b16 %v120
    %v159 = vunpack.c.h.b16 %v120
    %v160 = vunpack.c.l.b16 %v121
    %v161 = vunpack.c.h.b16 %v121
    %v162 = vunpack.c.l.b16 %v122
    %v163 = vunpack.c.l.b16 %v123
    %v164 = vunpack.c.h.b16 %v123
    %v165 = vunpack.c.l.b16 %v124
    %v166 = vunpack.c.h.b16 %v124
    %v167 = vunpack.c.l.b16 %v125
    %v168 = vunpack.c.l.b16 %v126
    %v169 = vunpack.c.h.b16 %v126
    %v170 = vunpack.c.l.b16 %v127
    %v171 = vunpack.c.h.b16 %v127
    %v172 = vunpack.c.l.b16 %v128
    %v173 = vpack.c.b16 %v158, %v153
    %v174 = vpack.c.b16 %v159, %v154
    %v175 = vpack.c.b16 %v160, %v155
    %v176 = vpack.c.b16 %v161, %v156
    %v177 = vpack.c.b16 %v162, %v157
    %v178 = vpack.c.b16 %v168, %v163
    %v179 = vpack.c.b16 %v169, %v164
    %v180 = vpack.c.b16 %v170, %v165
    %v181 = vpack.c.b16 %v171, %v166
    %v182 = vpack.c.b16 %v172, %v167
    %vm193 = vcmask 261120
    %v195 = vsel %vm193, %v116, 0
    %197 = vmatpush.bf16.msra.mxu0 0
    %198 = vmatpush.bf16.msra.mxu0 0
    %199 = vmatpush.bf16.msra.mxu0 0
    %200 = vmatpush.bf16.msra.mxu0 0
    %201 = vmatpush.bf16.msra.mxu0 0
    %202 = vmatpush.bf16.msra.mxu0 0
    %203 = vmatpush.bf16.msra.mxu0 %v178
    %204 = vmatpush.bf16.msra.mxu0 %v173
    %205 = vmatmul.bf16.gmra.mxu0 %v195
    %v206 = vpop.f32.mrf.mxu0
    %v207 = vadd.f32 %v131, %v206
    %v208 = vpop.f32.mrf.mxu0
    %209 = vdwg.mxu0
    %210 = vmatpush.bf16.msra.mxu0 0
    %211 = vmatpush.bf16.msra.mxu0 0
    %212 = vmatpush.bf16.msra.mxu0 0
    %213 = vmatpush.bf16.msra.mxu0 0
    %214 = vmatpush.bf16.msra.mxu0 0
    %215 = vmatpush.bf16.msra.mxu0 0
    %216 = vmatpush.bf16.msra.mxu0 %v179
    %217 = vmatpush.bf16.msra.mxu0 %v174
    %218 = vmatmul.bf16.gmra.mxu0 %v195
    %v219 = vpop.f32.mrf.mxu0
    %v220 = vadd.f32 %v132, %v219
    %v221 = vpop.f32.mrf.mxu0
    %222 = vdwg.mxu0
    %223 = vmatpush.bf16.msra.mxu0 0
    %224 = vmatpush.bf16.msra.mxu0 0
    %225 = vmatpush.bf16.msra.mxu0 0
    %226 = vmatpush.bf16.msra.mxu0 0
    %227 = vmatpush.bf16.msra.mxu0 0
    %228 = vmatpush.bf16.msra.mxu0 0
    %229 = vmatpush.bf16.msra.mxu0 %v180
    %230 = vmatpush.bf16.msra.mxu0 %v175
    %231 = vmatmul.bf16.gmra.mxu0 %v195
    %v232 = vpop.f32.mrf.mxu0
    %v233 = vadd.f32 %v133, %v232
    %v234 = vpop.f32.mrf.mxu0
    %235 = vdwg.mxu0
    %236 = vmatpush.bf16.msra.mxu0 0
    %237 = vmatpush.bf16.msra.mxu0 0
    %238 = vmatpush.bf16.msra.mxu0 0
    %239 = vmatpush.bf16.msra.mxu0 0
    %240 = vmatpush.bf16.msra.mxu0 0
    %241 = vmatpush.bf16.msra.mxu0 0
    %242 = vmatpush.bf16.msra.mxu0 %v181
    %243 = vmatpush.bf16.msra.mxu0 %v176
    %244 = vmatmul.bf16.gmra.mxu0 %v195
    %v245 = vpop.f32.mrf.mxu0
    %v246 = vadd.f32 %v134, %v245
    %v247 = vpop.f32.mrf.mxu0
    %248 = vdwg.mxu0
    %249 = vmatpush.bf16.msra.mxu0 0
    %250 = vmatpush.bf16.msra.mxu0 0
    %251 = vmatpush.bf16.msra.mxu0 0
    %252 = vmatpush.bf16.msra.mxu0 0
    %253 = vmatpush.bf16.msra.mxu0 0
    %254 = vmatpush.bf16.msra.mxu0 0
    %255 = vmatpush.bf16.msra.mxu0 %v182
    %256 = vmatpush.bf16.msra.mxu0 %v177
    %257 = vmatmul.bf16.gmra.mxu0 %v195
    %v258 = vpop.f32.mrf.mxu0
    %v259 = vadd.f32 %v135, %v258
    %v260 = vpop.f32.mrf.mxu0
    %261 = vdwg.mxu0
    %v262 = vmax.f32 %v207, 0.0
    %v263 = vmax.f32 %v220, 0.0
    %v264 = vmax.f32 %v233, 0.0
    %v265 = vmax.f32 %v246, 0.0
    %v266 = vmax.f32 %v259, 0.0
    %v267 = vpack.c.bf16 %v262, %v262
    %v268 = vpack.c.bf16 %v263, %v263
    %v269 = vpack.c.bf16 %v264, %v264
    %v270 = vpack.c.bf16 %v265, %v265
    %v271 = vpack.c.bf16 %v266, %v266
    %v272 = vld [vmem:[#allocation8] sm:$0xff]
    %v273 = vld [vmem:[#allocation8 + $0x8] sm:$0xff]
    %v274 = vld [vmem:[#allocation8 + $0x10] sm:$0xf]
    %v275 = vld [vmem:[#allocation8 + $0x14] sm:$0xff]
    %v276 = vld [vmem:[#allocation8 + $0x1c] sm:$0xff]
    %v277 = vld [vmem:[#allocation8 + $0x24] sm:$0xf]
    %v278 = vld [vmem:[#allocation8 + $0x28] sm:$0xff]
    %v279 = vld [vmem:[#allocation8 + $0x30] sm:$0xff]
    %v280 = vld [vmem:[#allocation8 + $0x38] sm:$0xf]
    %v281 = vld [vmem:[#allocation8 + $0x3c] sm:$0xff]
    %v282 = vld [vmem:[#allocation8 + $0x44] sm:$0xff]
    %v283 = vld [vmem:[#allocation8 + $0x4c] sm:$0xf]
    %v284 = vld [vmem:[#allocation8 + $0x50] sm:$0xff]
    %v285 = vld [vmem:[#allocation8 + $0x58] sm:$0xff]
    %v286 = vld [vmem:[#allocation8 + $0x60] sm:$0xf]
    %v287 = vld [vmem:[#allocation8 + $0x64] sm:$0xff]
    %v288 = vld [vmem:[#allocation8 + $0x6c] sm:$0xff]
    %v289 = vld [vmem:[#allocation8 + $0x74] sm:$0xf]
    %v290 = vld [vmem:[#allocation8 + $0x78] sm:$0xff]
    %v291 = vld [vmem:[#allocation8 + $0x80] sm:$0xff]
    %v292 = vld [vmem:[#allocation8 + $0x88] sm:$0xf]
    %v293 = vld [vmem:[#allocation8 + $0x8c] sm:$0xff]
    %v294 = vld [vmem:[#allocation8 + $0x94] sm:$0xff]
    %v295 = vld [vmem:[#allocation8 + $0x9c] sm:$0xf]
    %v296 = vld [vmem:[#allocation8 + $0xa0] sm:$0xff]
    %v297 = vld [vmem:[#allocation8 + $0xa8] sm:$0xff]
    %v298 = vld [vmem:[#allocation8 + $0xb0] sm:$0xf]
    %v299 = vld [vmem:[#allocation8 + $0xb4] sm:$0xff]
    %v300 = vld [vmem:[#allocation8 + $0xbc] sm:$0xff]
    %v301 = vld [vmem:[#allocation8 + $0xc4] sm:$0xf]
    %v302 = vld [vmem:[#allocation8 + $0xc8] sm:$0xff]
    %v303 = vld [vmem:[#allocation8 + $0xd0] sm:$0xff]
    %v304 = vld [vmem:[#allocation8 + $0xd8] sm:$0xf]
    %v305 = vld [vmem:[#allocation8 + $0xdc] sm:$0xff]
    %v306 = vld [vmem:[#allocation8 + $0xe4] sm:$0xff]
    %v307 = vld [vmem:[#allocation8 + $0xec] sm:$0xf]
    %v308 = vld [vmem:[#allocation8 + $0xf0] sm:$0xff]
    %v309 = vld [vmem:[#allocation8 + $0xf8] sm:$0xff]
    %v310 = vld [vmem:[#allocation8 + $0x100] sm:$0xf]
    %v311 = vld [vmem:[#allocation8 + $0x104] sm:$0xff]
    %v312 = vld [vmem:[#allocation8 + $0x10c] sm:$0xff]
    %v313 = vld [vmem:[#allocation8 + $0x114] sm:$0xf]
    %v314 = vld [vmem:[#allocation8 + $0x118] sm:$0xff]
    %v315 = vld [vmem:[#allocation8 + $0x120] sm:$0xff]
    %v316 = vld [vmem:[#allocation8 + $0x128] sm:$0xf]
    %v317 = vld [vmem:[#allocation8 + $0x12c] sm:$0xff]
    %v318 = vld [vmem:[#allocation8 + $0x134] sm:$0xff]
    %v319 = vld [vmem:[#allocation8 + $0x13c] sm:$0xf]
    %v320 = vld [vmem:[#allocation8 + $0x140] sm:$0xff]
    %v321 = vld [vmem:[#allocation8 + $0x148] sm:$0xff]
    %v322 = vld [vmem:[#allocation8 + $0x150] sm:$0xf]
    %v323 = vld [vmem:[#allocation8 + $0x154] sm:$0xff]
    %v324 = vld [vmem:[#allocation8 + $0x15c] sm:$0xff]
    %v325 = vld [vmem:[#allocation8 + $0x164] sm:$0xf]
    %v326 = vld [vmem:[#allocation8 + $0x168] sm:$0xff]
    %v327 = vld [vmem:[#allocation8 + $0x170] sm:$0xff]
    %v328 = vld [vmem:[#allocation8 + $0x178] sm:$0xf]
    %v329 = vld [vmem:[#allocation8 + $0x17c] sm:$0xff]
    %v330 = vld [vmem:[#allocation8 + $0x184] sm:$0xff]
    %v331 = vld [vmem:[#allocation8 + $0x18c] sm:$0xf]
    %v332 = vld [vmem:[#allocation8 + $0x190] sm:$0xff]
    %v333 = vld [vmem:[#allocation8 + $0x198] sm:$0xff]
    %v334 = vld [vmem:[#allocation8 + $0x1a0] sm:$0xf]
    %v335 = vld [vmem:[#allocation8 + $0x1a4] sm:$0xff]
    %v336 = vld [vmem:[#allocation8 + $0x1ac] sm:$0xff]
    %v337 = vld [vmem:[#allocation8 + $0x1b4] sm:$0xf]
    %v338 = vld [vmem:[#allocation8 + $0x1b8] sm:$0xff]
    %v339 = vld [vmem:[#allocation8 + $0x1c0] sm:$0xff]
    %v340 = vld [vmem:[#allocation8 + $0x1c8] sm:$0xf]
    %v341 = vld [vmem:[#allocation8 + $0x1cc] sm:$0xff]
    %v342 = vld [vmem:[#allocation8 + $0x1d4] sm:$0xff]
    %v343 = vld [vmem:[#allocation8 + $0x1dc] sm:$0xf]
    %v344 = vld [vmem:[#allocation8 + $0x1e0] sm:$0xff]
    %v345 = vld [vmem:[#allocation8 + $0x1e8] sm:$0xff]
    %v346 = vld [vmem:[#allocation8 + $0x1f0] sm:$0xf]
    %v347 = vld [vmem:[#allocation8 + $0x1f4] sm:$0xff]
    %v348 = vld [vmem:[#allocation8 + $0x1fc] sm:$0xff]
    %v349 = vld [vmem:[#allocation8 + $0x204] sm:$0xf]
    %v350 = vld [vmem:[#allocation8 + $0x208] sm:$0xff]
    %v351 = vld [vmem:[#allocation8 + $0x210] sm:$0xff]
    %v352 = vld [vmem:[#allocation8 + $0x218] sm:$0xf]
    %v353 = vld [vmem:[#allocation8 + $0x21c] sm:$0xff]
    %v354 = vld [vmem:[#allocation8 + $0x224] sm:$0xff]
    %v355 = vld [vmem:[#allocation8 + $0x22c] sm:$0xf]
    %v356 = vld [vmem:[#allocation8 + $0x230] sm:$0xff]
    %v357 = vld [vmem:[#allocation8 + $0x238] sm:$0xff]
    %v358 = vld [vmem:[#allocation8 + $0x240] sm:$0xf]
    %v359 = vld [vmem:[#allocation8 + $0x244] sm:$0xff]
    %v360 = vld [vmem:[#allocation8 + $0x24c] sm:$0xff]
    %v361 = vld [vmem:[#allocation8 + $0x254] sm:$0xf]
    %v362 = vld [vmem:[#allocation8 + $0x258] sm:$0xff]
    %v363 = vld [vmem:[#allocation8 + $0x260] sm:$0xff]
    %v364 = vld [vmem:[#allocation8 + $0x268] sm:$0xf]
    %v365 = vld [vmem:[#allocation8 + $0x26c] sm:$0xff]
    %v366 = vld [vmem:[#allocation8 + $0x274] sm:$0xff]
    %v367 = vld [vmem:[#allocation8 + $0x27c] sm:$0xf]
    %v368 = vld [vmem:[#allocation8 + $0x280] sm:$0xff]
    %v369 = vld [vmem:[#allocation8 + $0x288] sm:$0xff]
    %v370 = vld [vmem:[#allocation8 + $0x290] sm:$0xf]
    %v371 = vld [vmem:[#allocation8 + $0x294] sm:$0xff]
    %v372 = vld [vmem:[#allocation8 + $0x29c] sm:$0xff]
    %v373 = vld [vmem:[#allocation8 + $0x2a4] sm:$0xf]
    %v374 = vld [vmem:[#allocation8 + $0x2a8] sm:$0xff]
    %v375 = vld [vmem:[#allocation8 + $0x2b0] sm:$0xff]
    %v376 = vld [vmem:[#allocation8 + $0x2b8] sm:$0xf]
    %v377 = vld [vmem:[#allocation8 + $0x2bc] sm:$0xff]
    %v378 = vld [vmem:[#allocation8 + $0x2c4] sm:$0xff]
    %v379 = vld [vmem:[#allocation8 + $0x2cc] sm:$0xf]
    %v380 = vld [vmem:[#allocation8 + $0x2d0] sm:$0xff]
    %v381 = vld [vmem:[#allocation8 + $0x2d8] sm:$0xff]
    %v382 = vld [vmem:[#allocation8 + $0x2e0] sm:$0xf]
    %v383 = vld [vmem:[#allocation8 + $0x2e4] sm:$0xff]
    %v384 = vld [vmem:[#allocation8 + $0x2ec] sm:$0xff]
    %v385 = vld [vmem:[#allocation8 + $0x2f4] sm:$0xf]
    %v386 = vld [vmem:[#allocation8 + $0x2f8] sm:$0xff]
    %v387 = vld [vmem:[#allocation8 + $0x300] sm:$0xff]
    %v388 = vld [vmem:[#allocation8 + $0x308] sm:$0xf]
    %v389 = vld [vmem:[#allocation8 + $0x30c] sm:$0xff]
    %v390 = vld [vmem:[#allocation8 + $0x314] sm:$0xff]
    %v391 = vld [vmem:[#allocation8 + $0x31c] sm:$0xf]
    %v392 = vld [vmem:[#allocation8 + $0x320] sm:$0xff]
    %v393 = vld [vmem:[#allocation8 + $0x328] sm:$0xff]
    %v394 = vld [vmem:[#allocation8 + $0x330] sm:$0xf]
    %v395 = vld [vmem:[#allocation8 + $0x334] sm:$0xff]
    %v396 = vld [vmem:[#allocation8 + $0x33c] sm:$0xff]
    %v397 = vld [vmem:[#allocation8 + $0x344] sm:$0xf]
    %v398 = vld [vmem:[#allocation8 + $0x348] sm:$0xff]
    %v399 = vld [vmem:[#allocation8 + $0x350] sm:$0xff]
    %v400 = vld [vmem:[#allocation8 + $0x358] sm:$0xf]
    %v401 = vld [vmem:[#allocation8 + $0x35c] sm:$0xff]
    %v402 = vld [vmem:[#allocation8 + $0x364] sm:$0xff]
    %v403 = vld [vmem:[#allocation8 + $0x36c] sm:$0xf]
    %v404 = vld [vmem:[#allocation8 + $0x370] sm:$0xff]
    %v405 = vld [vmem:[#allocation8 + $0x378] sm:$0xff]
    %v406 = vld [vmem:[#allocation8 + $0x380] sm:$0xf]
    %v407 = vld [vmem:[#allocation8 + $0x384] sm:$0xff]
    %v408 = vld [vmem:[#allocation8 + $0x38c] sm:$0xff]
    %v409 = vld [vmem:[#allocation8 + $0x394] sm:$0xf]
    %v410 = vld [vmem:[#allocation8 + $0x398] sm:$0xff]
    %v411 = vld [vmem:[#allocation8 + $0x3a0] sm:$0xff]
    %v412 = vld [vmem:[#allocation8 + $0x3a8] sm:$0xf]
    %v413 = vld [vmem:[#allocation8 + $0x3ac] sm:$0xff]
    %v414 = vld [vmem:[#allocation8 + $0x3b4] sm:$0xff]
    %v415 = vld [vmem:[#allocation8 + $0x3bc] sm:$0xf]
    %v416 = vld [vmem:[#allocation8 + $0x3c0] sm:$0xff]
    %v417 = vld [vmem:[#allocation8 + $0x3c8] sm:$0xff]
    %v418 = vld [vmem:[#allocation8 + $0x3d0] sm:$0xf]
    %v419 = vld [vmem:[#allocation8 + $0x3d4] sm:$0xff]
    %v420 = vld [vmem:[#allocation8 + $0x3dc] sm:$0xff]
    %v421 = vld [vmem:[#allocation8 + $0x3e4] sm:$0xf]
    %v422 = vld [vmem:[#allocation8 + $0x3e8] sm:$0xff]
    %v423 = vld [vmem:[#allocation8 + $0x3f0] sm:$0xff]
    %v424 = vld [vmem:[#allocation8 + $0x3f8] sm:$0xf]
    %v425 = vld [vmem:[#allocation8 + $0x3fc] sm:$0xff]
    %v426 = vld [vmem:[#allocation8 + $0x404] sm:$0xff]
    %v427 = vld [vmem:[#allocation8 + $0x40c] sm:$0xf]
    %v428 = vld [vmem:[#allocation8 + $0x410] sm:$0xff]
    %v429 = vld [vmem:[#allocation8 + $0x418] sm:$0xff]
    %v430 = vld [vmem:[#allocation8 + $0x420] sm:$0xf]
    %v431 = vld [vmem:[#allocation8 + $0x424] sm:$0xff]
    %v432 = vld [vmem:[#allocation8 + $0x42c] sm:$0xff]
    %v433 = vld [vmem:[#allocation8 + $0x434] sm:$0xf]
    %v434 = vld [vmem:[#allocation8 + $0x438] sm:$0xff]
    %v435 = vld [vmem:[#allocation8 + $0x440] sm:$0xff]
    %v436 = vld [vmem:[#allocation8 + $0x448] sm:$0xf]
    %v437 = vld [vmem:[#allocation8 + $0x44c] sm:$0xff]
    %v438 = vld [vmem:[#allocation8 + $0x454] sm:$0xff]
    %v439 = vld [vmem:[#allocation8 + $0x45c] sm:$0xf]
    %v440 = vld [vmem:[#allocation8 + $0x460] sm:$0xff]
    %v441 = vld [vmem:[#allocation8 + $0x468] sm:$0xff]
    %v442 = vld [vmem:[#allocation8 + $0x470] sm:$0xf]
    %v443 = vld [vmem:[#allocation8 + $0x474] sm:$0xff]
    %v444 = vld [vmem:[#allocation8 + $0x47c] sm:$0xff]
    %v445 = vld [vmem:[#allocation8 + $0x484] sm:$0xf]
    %v446 = vld [vmem:[#allocation8 + $0x488] sm:$0xff]
    %v447 = vld [vmem:[#allocation8 + $0x490] sm:$0xff]
    %v448 = vld [vmem:[#allocation8 + $0x498] sm:$0xf]
    %v449 = vld [vmem:[#allocation8 + $0x49c] sm:$0xff]
    %v450 = vld [vmem:[#allocation8 + $0x4a4] sm:$0xff]
    %v451 = vld [vmem:[#allocation8 + $0x4ac] sm:$0xf]
    %v452 = vld [vmem:[#allocation8 + $0x4b0] sm:$0xff]
    %v453 = vld [vmem:[#allocation8 + $0x4b8] sm:$0xff]
    %v454 = vld [vmem:[#allocation8 + $0x4c0] sm:$0xf]
    %v455 = vld [vmem:[#allocation8 + $0x4c4] sm:$0xff]
    %v456 = vld [vmem:[#allocation8 + $0x4cc] sm:$0xff]
    %v457 = vld [vmem:[#allocation8 + $0x4d4] sm:$0xf]
    %v458 = vld [vmem:[#allocation8 + $0x4d8] sm:$0xff]
    %v459 = vld [vmem:[#allocation8 + $0x4e0] sm:$0xff]
    %v460 = vld [vmem:[#allocation8 + $0x4e8] sm:$0xf]
    %v461 = vld [vmem:[#allocation8 + $0x4ec] sm:$0xff]
    %v462 = vld [vmem:[#allocation8 + $0x4f4] sm:$0xff]
    %v463 = vld [vmem:[#allocation8 + $0x4fc] sm:$0xf]
    %v464 = vld [vmem:[#allocation8 + $0x500] sm:$0xff]
    %v465 = vld [vmem:[#allocation8 + $0x508] sm:$0xff]
    %v466 = vld [vmem:[#allocation8 + $0x510] sm:$0xf]
    %v467 = vld [vmem:[#allocation8 + $0x514] sm:$0xff]
    %v468 = vld [vmem:[#allocation8 + $0x51c] sm:$0xff]
    %v469 = vld [vmem:[#allocation8 + $0x524] sm:$0xf]
    %v470 = vld [vmem:[#allocation8 + $0x528] sm:$0xff]
    %v471 = vld [vmem:[#allocation8 + $0x530] sm:$0xff]
    %v472 = vld [vmem:[#allocation8 + $0x538] sm:$0xf]
    %v473 = vld [vmem:[#allocation8 + $0x53c] sm:$0xff]
    %v474 = vld [vmem:[#allocation8 + $0x544] sm:$0xff]
    %v475 = vld [vmem:[#allocation8 + $0x54c] sm:$0xf]
    %v476 = vld [vmem:[#allocation8 + $0x550] sm:$0xff]
    %v477 = vld [vmem:[#allocation8 + $0x558] sm:$0xff]
    %v478 = vld [vmem:[#allocation8 + $0x560] sm:$0xf]
    %v479 = vld [vmem:[#allocation8 + $0x564] sm:$0xff]
    %v480 = vld [vmem:[#allocation8 + $0x56c] sm:$0xff]
    %v481 = vld [vmem:[#allocation8 + $0x574] sm:$0xf]
    %v482 = vld [vmem:[#allocation8 + $0x578] sm:$0xff]
    %v483 = vld [vmem:[#allocation8 + $0x580] sm:$0xff]
    %v484 = vld [vmem:[#allocation8 + $0x588] sm:$0xf]
    %v485 = vld [vmem:[#allocation8 + $0x58c] sm:$0xff]
    %v486 = vld [vmem:[#allocation8 + $0x594] sm:$0xff]
    %v487 = vld [vmem:[#allocation8 + $0x59c] sm:$0xf]
    %v488 = vld [vmem:[#allocation8 + $0x5a0] sm:$0xff]
    %v489 = vld [vmem:[#allocation8 + $0x5a8] sm:$0xff]
    %v490 = vld [vmem:[#allocation8 + $0x5b0] sm:$0xf]
    %v491 = vld [vmem:[#allocation8 + $0x5b4] sm:$0xff]
    %v492 = vld [vmem:[#allocation8 + $0x5bc] sm:$0xff]
    %v493 = vld [vmem:[#allocation8 + $0x5c4] sm:$0xf]
    %v494 = vld [vmem:[#allocation8 + $0x5c8] sm:$0xff]
    %v495 = vld [vmem:[#allocation8 + $0x5d0] sm:$0xff]
    %v496 = vld [vmem:[#allocation8 + $0x5d8] sm:$0xf]
    %v497 = vld [vmem:[#allocation8 + $0x5dc] sm:$0xff]
    %v498 = vld [vmem:[#allocation8 + $0x5e4] sm:$0xff]
    %v499 = vld [vmem:[#allocation8 + $0x5ec] sm:$0xf]
    %v500 = vld [vmem:[#allocation8 + $0x5f0] sm:$0xff]
    %v501 = vld [vmem:[#allocation8 + $0x5f8] sm:$0xff]
    %v502 = vld [vmem:[#allocation8 + $0x600] sm:$0xf]
    %v503 = vld [vmem:[#allocation8 + $0x604] sm:$0xff]
    %v504 = vld [vmem:[#allocation8 + $0x60c] sm:$0xff]
    %v505 = vld [vmem:[#allocation8 + $0x614] sm:$0xf]
    %v506 = vld [vmem:[#allocation8 + $0x618] sm:$0xff]
    %v507 = vld [vmem:[#allocation8 + $0x620] sm:$0xff]
    %v508 = vld [vmem:[#allocation8 + $0x628] sm:$0xf]
    %v509 = vld [vmem:[#allocation8 + $0x62c] sm:$0xff]
    %v510 = vld [vmem:[#allocation8 + $0x634] sm:$0xff]
    %v511 = vld [vmem:[#allocation8 + $0x63c] sm:$0xf]
    %v512 = vld [vmem:[#allocation10] sm:$0x1f]
    %v514 = vperm.slane %v512, 0
    %v515 = vperm.slane %v512, 1
    %v516 = vperm.slane %v512, 2
    %v517 = vperm.slane %v512, 3
    %v518 = vperm.slane %v512, 4
    %v764 = vunpack.c.l.b16 %v272
    %v765 = vunpack.c.h.b16 %v272
    %v766 = vunpack.c.l.b16 %v273
    %v767 = vunpack.c.h.b16 %v273
    %v768 = vunpack.c.l.b16 %v274
    %v769 = vunpack.c.l.b16 %v275
    %v770 = vunpack.c.h.b16 %v275
    %v771 = vunpack.c.l.b16 %v276
    %v772 = vunpack.c.h.b16 %v276
    %v773 = vunpack.c.l.b16 %v277
    %v774 = vunpack.c.l.b16 %v278
    %v775 = vunpack.c.h.b16 %v278
    %v776 = vunpack.c.l.b16 %v279
    %v777 = vunpack.c.h.b16 %v279
    %v778 = vunpack.c.l.b16 %v280
    %v779 = vunpack.c.l.b16 %v281
    %v780 = vunpack.c.h.b16 %v281
    %v781 = vunpack.c.l.b16 %v282
    %v782 = vunpack.c.h.b16 %v282
    %v783 = vunpack.c.l.b16 %v283
    %v784 = vunpack.c.l.b16 %v284
    %v785 = vunpack.c.h.b16 %v284
    %v786 = vunpack.c.l.b16 %v285
    %v787 = vunpack.c.h.b16 %v285
    %v788 = vunpack.c.l.b16 %v286
    %v789 = vunpack.c.l.b16 %v287
    %v790 = vunpack.c.h.b16 %v287
    %v791 = vunpack.c.l.b16 %v288
    %v792 = vunpack.c.h.b16 %v288
    %v793 = vunpack.c.l.b16 %v289
    %v794 = vunpack.c.l.b16 %v290
    %v795 = vunpack.c.h.b16 %v290
    %v796 = vunpack.c.l.b16 %v291
    %v797 = vunpack.c.h.b16 %v291
    %v798 = vunpack.c.l.b16 %v292
    %v799 = vunpack.c.l.b16 %v293
    %v800 = vunpack.c.h.b16 %v293
    %v801 = vunpack.c.l.b16 %v294
    %v802 = vunpack.c.h.b16 %v294
    %v803 = vunpack.c.l.b16 %v295
    %v804 = vunpack.c.l.b16 %v296
    %v805 = vunpack.c.h.b16 %v296
    %v806 = vunpack.c.l.b16 %v297
    %v807 = vunpack.c.h.b16 %v297
    %v808 = vunpack.c.l.b16 %v298
    %v809 = vunpack.c.l.b16 %v299
    %v810 = vunpack.c.h.b16 %v299
    %v811 = vunpack.c.l.b16 %v300
    %v812 = vunpack.c.h.b16 %v300
    %v813 = vunpack.c.l.b16 %v301
    %v814 = vunpack.c.l.b16 %v302
    %v815 = vunpack.c.h.b16 %v302
    %v816 = vunpack.c.l.b16 %v303
    %v817 = vunpack.c.h.b16 %v303
    %v818 = vunpack.c.l.b16 %v304
    %v819 = vunpack.c.l.b16 %v305
    %v820 = vunpack.c.h.b16 %v305
    %v821 = vunpack.c.l.b16 %v306
    %v822 = vunpack.c.h.b16 %v306
    %v823 = vunpack.c.l.b16 %v307
    %v824 = vunpack.c.l.b16 %v308
    %v825 = vunpack.c.h.b16 %v308
    %v826 = vunpack.c.l.b16 %v309
    %v827 = vunpack.c.h.b16 %v309
    %v828 = vunpack.c.l.b16 %v310
    %v829 = vunpack.c.l.b16 %v311
    %v830 = vunpack.c.h.b16 %v311
    %v831 = vunpack.c.l.b16 %v312
    %v832 = vunpack.c.h.b16 %v312
    %v833 = vunpack.c.l.b16 %v313
    %v834 = vunpack.c.l.b16 %v314
    %v835 = vunpack.c.h.b16 %v314
    %v836 = vunpack.c.l.b16 %v315
    %v837 = vunpack.c.h.b16 %v315
    %v838 = vunpack.c.l.b16 %v316
    %v839 = vunpack.c.l.b16 %v317
    %v840 = vunpack.c.h.b16 %v317
    %v841 = vunpack.c.l.b16 %v318
    %v842 = vunpack.c.h.b16 %v318
    %v843 = vunpack.c.l.b16 %v319
    %v844 = vunpack.c.l.b16 %v320
    %v845 = vunpack.c.h.b16 %v320
    %v846 = vunpack.c.l.b16 %v321
    %v847 = vunpack.c.h.b16 %v321
    %v848 = vunpack.c.l.b16 %v322
    %v849 = vunpack.c.l.b16 %v323
    %v850 = vunpack.c.h.b16 %v323
    %v851 = vunpack.c.l.b16 %v324
    %v852 = vunpack.c.h.b16 %v324
    %v853 = vunpack.c.l.b16 %v325
    %v854 = vunpack.c.l.b16 %v326
    %v855 = vunpack.c.h.b16 %v326
    %v856 = vunpack.c.l.b16 %v327
    %v857 = vunpack.c.h.b16 %v327
    %v858 = vunpack.c.l.b16 %v328
    %v859 = vunpack.c.l.b16 %v329
    %v860 = vunpack.c.h.b16 %v329
    %v861 = vunpack.c.l.b16 %v330
    %v862 = vunpack.c.h.b16 %v330
    %v863 = vunpack.c.l.b16 %v331
    %v864 = vunpack.c.l.b16 %v332
    %v865 = vunpack.c.h.b16 %v332
    %v866 = vunpack.c.l.b16 %v333
    %v867 = vunpack.c.h.b16 %v333
    %v868 = vunpack.c.l.b16 %v334
    %v869 = vunpack.c.l.b16 %v335
    %v870 = vunpack.c.h.b16 %v335
    %v871 = vunpack.c.l.b16 %v336
    %v872 = vunpack.c.h.b16 %v336
    %v873 = vunpack.c.l.b16 %v337
    %v874 = vunpack.c.l.b16 %v338
    %v875 = vunpack.c.h.b16 %v338
    %v876 = vunpack.c.l.b16 %v339
    %v877 = vunpack.c.h.b16 %v339
    %v878 = vunpack.c.l.b16 %v340
    %v879 = vunpack.c.l.b16 %v341
    %v880 = vunpack.c.h.b16 %v341
    %v881 = vunpack.c.l.b16 %v342
    %v882 = vunpack.c.h.b16 %v342
    %v883 = vunpack.c.l.b16 %v343
    %v884 = vunpack.c.l.b16 %v344
    %v885 = vunpack.c.h.b16 %v344
    %v886 = vunpack.c.l.b16 %v345
    %v887 = vunpack.c.h.b16 %v345
    %v888 = vunpack.c.l.b16 %v346
    %v889 = vunpack.c.l.b16 %v347
    %v890 = vunpack.c.h.b16 %v347
    %v891 = vunpack.c.l.b16 %v348
    %v892 = vunpack.c.h.b16 %v348
    %v893 = vunpack.c.l.b16 %v349
    %v894 = vunpack.c.l.b16 %v350
    %v895 = vunpack.c.h.b16 %v350
    %v896 = vunpack.c.l.b16 %v351
    %v897 = vunpack.c.h.b16 %v351
    %v898 = vunpack.c.l.b16 %v352
    %v899 = vunpack.c.l.b16 %v353
    %v900 = vunpack.c.h.b16 %v353
    %v901 = vunpack.c.l.b16 %v354
    %v902 = vunpack.c.h.b16 %v354
    %v903 = vunpack.c.l.b16 %v355
    %v904 = vunpack.c.l.b16 %v356
    %v905 = vunpack.c.h.b16 %v356
    %v906 = vunpack.c.l.b16 %v357
    %v907 = vunpack.c.h.b16 %v357
    %v908 = vunpack.c.l.b16 %v358
    %v909 = vunpack.c.l.b16 %v359
    %v910 = vunpack.c.h.b16 %v359
    %v911 = vunpack.c.l.b16 %v360
    %v912 = vunpack.c.h.b16 %v360
    %v913 = vunpack.c.l.b16 %v361
    %v914 = vunpack.c.l.b16 %v362
    %v915 = vunpack.c.h.b16 %v362
    %v916 = vunpack.c.l.b16 %v363
    %v917 = vunpack.c.h.b16 %v363
    %v918 = vunpack.c.l.b16 %v364
    %v919 = vunpack.c.l.b16 %v365
    %v920 = vunpack.c.h.b16 %v365
    %v921 = vunpack.c.l.b16 %v366
    %v922 = vunpack.c.h.b16 %v366
    %v923 = vunpack.c.l.b16 %v367
    %v924 = vunpack.c.l.b16 %v368
    %v925 = vunpack.c.h.b16 %v368
    %v926 = vunpack.c.l.b16 %v369
    %v927 = vunpack.c.h.b16 %v369
    %v928 = vunpack.c.l.b16 %v370
    %v929 = vunpack.c.l.b16 %v371
    %v930 = vunpack.c.h.b16 %v371
    %v931 = vunpack.c.l.b16 %v372
    %v932 = vunpack.c.h.b16 %v372
    %v933 = vunpack.c.l.b16 %v373
    %v934 = vunpack.c.l.b16 %v374
    %v935 = vunpack.c.h.b16 %v374
    %v936 = vunpack.c.l.b16 %v375
    %v937 = vunpack.c.h.b16 %v375
    %v938 = vunpack.c.l.b16 %v376
    %v939 = vunpack.c.l.b16 %v377
    %v940 = vunpack.c.h.b16 %v377
    %v941 = vunpack.c.l.b16 %v378
    %v942 = vunpack.c.h.b16 %v378
    %v943 = vunpack.c.l.b16 %v379
    %v944 = vunpack.c.l.b16 %v380
    %v945 = vunpack.c.h.b16 %v380
    %v946 = vunpack.c.l.b16 %v381
    %v947 = vunpack.c.h.b16 %v381
    %v948 = vunpack.c.l.b16 %v382
    %v949 = vunpack.c.l.b16 %v383
    %v950 = vunpack.c.h.b16 %v383
    %v951 = vunpack.c.l.b16 %v384
    %v952 = vunpack.c.h.b16 %v384
    %v953 = vunpack.c.l.b16 %v385
    %v954 = vunpack.c.l.b16 %v386
    %v955 = vunpack.c.h.b16 %v386
    %v956 = vunpack.c.l.b16 %v387
    %v957 = vunpack.c.h.b16 %v387
    %v958 = vunpack.c.l.b16 %v388
    %v959 = vunpack.c.l.b16 %v389
    %v960 = vunpack.c.h.b16 %v389
    %v961 = vunpack.c.l.b16 %v390
    %v962 = vunpack.c.h.b16 %v390
    %v963 = vunpack.c.l.b16 %v391
    %v964 = vunpack.c.l.b16 %v392
    %v965 = vunpack.c.h.b16 %v392
    %v966 = vunpack.c.l.b16 %v393
    %v967 = vunpack.c.h.b16 %v393
    %v968 = vunpack.c.l.b16 %v394
    %v969 = vunpack.c.l.b16 %v395
    %v970 = vunpack.c.h.b16 %v395
    %v971 = vunpack.c.l.b16 %v396
    %v972 = vunpack.c.h.b16 %v396
    %v973 = vunpack.c.l.b16 %v397
    %v974 = vunpack.c.l.b16 %v398
    %v975 = vunpack.c.h.b16 %v398
    %v976 = vunpack.c.l.b16 %v399
    %v977 = vunpack.c.h.b16 %v399
    %v978 = vunpack.c.l.b16 %v400
    %v979 = vunpack.c.l.b16 %v401
    %v980 = vunpack.c.h.b16 %v401
    %v981 = vunpack.c.l.b16 %v402
    %v982 = vunpack.c.h.b16 %v402
    %v983 = vunpack.c.l.b16 %v403
    %v984 = vunpack.c.l.b16 %v404
    %v985 = vunpack.c.h.b16 %v404
    %v986 = vunpack.c.l.b16 %v405
    %v987 = vunpack.c.h.b16 %v405
    %v988 = vunpack.c.l.b16 %v406
    %v989 = vunpack.c.l.b16 %v407
    %v990 = vunpack.c.h.b16 %v407
    %v991 = vunpack.c.l.b16 %v408
    %v992 = vunpack.c.h.b16 %v408
    %v993 = vunpack.c.l.b16 %v409
    %v994 = vunpack.c.l.b16 %v410
    %v995 = vunpack.c.h.b16 %v410
    %v996 = vunpack.c.l.b16 %v411
    %v997 = vunpack.c.h.b16 %v411
    %v998 = vunpack.c.l.b16 %v412
    %v999 = vunpack.c.l.b16 %v413
    %v1000 = vunpack.c.h.b16 %v413
    %v1001 = vunpack.c.l.b16 %v414
    %v1002 = vunpack.c.h.b16 %v414
    %v1003 = vunpack.c.l.b16 %v415
    %v1004 = vunpack.c.l.b16 %v416
    %v1005 = vunpack.c.h.b16 %v416
    %v1006 = vunpack.c.l.b16 %v417
    %v1007 = vunpack.c.h.b16 %v417
    %v1008 = vunpack.c.l.b16 %v418
    %v1009 = vunpack.c.l.b16 %v419
    %v1010 = vunpack.c.h.b16 %v419
    %v1011 = vunpack.c.l.b16 %v420
    %v1012 = vunpack.c.h.b16 %v420
    %v1013 = vunpack.c.l.b16 %v421
    %v1014 = vunpack.c.l.b16 %v422
    %v1015 = vunpack.c.h.b16 %v422
    %v1016 = vunpack.c.l.b16 %v423
    %v1017 = vunpack.c.h.b16 %v423
    %v1018 = vunpack.c.l.b16 %v424
    %v1019 = vunpack.c.l.b16 %v425
    %v1020 = vunpack.c.h.b16 %v425
    %v1021 = vunpack.c.l.b16 %v426
    %v1022 = vunpack.c.h.b16 %v426
    %v1023 = vunpack.c.l.b16 %v427
    %v1024 = vunpack.c.l.b16 %v428
    %v1025 = vunpack.c.h.b16 %v428
    %v1026 = vunpack.c.l.b16 %v429
    %v1027 = vunpack.c.h.b16 %v429
    %v1028 = vunpack.c.l.b16 %v430
    %v1029 = vunpack.c.l.b16 %v431
    %v1030 = vunpack.c.h.b16 %v431
    %v1031 = vunpack.c.l.b16 %v432
    %v1032 = vunpack.c.h.b16 %v432
    %v1033 = vunpack.c.l.b16 %v433
    %v1034 = vunpack.c.l.b16 %v434
    %v1035 = vunpack.c.h.b16 %v434
    %v1036 = vunpack.c.l.b16 %v435
    %v1037 = vunpack.c.h.b16 %v435
    %v1038 = vunpack.c.l.b16 %v436
    %v1039 = vunpack.c.l.b16 %v437
    %v1040 = vunpack.c.h.b16 %v437
    %v1041 = vunpack.c.l.b16 %v438
    %v1042 = vunpack.c.h.b16 %v438
    %v1043 = vunpack.c.l.b16 %v439
    %v1044 = vunpack.c.l.b16 %v440
    %v1045 = vunpack.c.h.b16 %v440
    %v1046 = vunpack.c.l.b16 %v441
    %v1047 = vunpack.c.h.b16 %v441
    %v1048 = vunpack.c.l.b16 %v442
    %v1049 = vunpack.c.l.b16 %v443
    %v1050 = vunpack.c.h.b16 %v443
    %v1051 = vunpack.c.l.b16 %v444
    %v1052 = vunpack.c.h.b16 %v444
    %v1053 = vunpack.c.l.b16 %v445
    %v1054 = vunpack.c.l.b16 %v446
    %v1055 = vunpack.c.h.b16 %v446
    %v1056 = vunpack.c.l.b16 %v447
    %v1057 = vunpack.c.h.b16 %v447
    %v1058 = vunpack.c.l.b16 %v448
    %v1059 = vunpack.c.l.b16 %v449
    %v1060 = vunpack.c.h.b16 %v449
    %v1061 = vunpack.c.l.b16 %v450
    %v1062 = vunpack.c.h.b16 %v450
    %v1063 = vunpack.c.l.b16 %v451
    %v1064 = vunpack.c.l.b16 %v452
    %v1065 = vunpack.c.h.b16 %v452
    %v1066 = vunpack.c.l.b16 %v453
    %v1067 = vunpack.c.h.b16 %v453
    %v1068 = vunpack.c.l.b16 %v454
    %v1069 = vunpack.c.l.b16 %v455
    %v1070 = vunpack.c.h.b16 %v455
    %v1071 = vunpack.c.l.b16 %v456
    %v1072 = vunpack.c.h.b16 %v456
    %v1073 = vunpack.c.l.b16 %v457
    %v1074 = vunpack.c.l.b16 %v458
    %v1075 = vunpack.c.h.b16 %v458
    %v1076 = vunpack.c.l.b16 %v459
    %v1077 = vunpack.c.h.b16 %v459
    %v1078 = vunpack.c.l.b16 %v460
    %v1079 = vunpack.c.l.b16 %v461
    %v1080 = vunpack.c.h.b16 %v461
    %v1081 = vunpack.c.l.b16 %v462
    %v1082 = vunpack.c.h.b16 %v462
    %v1083 = vunpack.c.l.b16 %v463
    %v1084 = vunpack.c.l.b16 %v464
    %v1085 = vunpack.c.h.b16 %v464
    %v1086 = vunpack.c.l.b16 %v465
    %v1087 = vunpack.c.h.b16 %v465
    %v1088 = vunpack.c.l.b16 %v466
    %v1089 = vunpack.c.l.b16 %v467
    %v1090 = vunpack.c.h.b16 %v467
    %v1091 = vunpack.c.l.b16 %v468
    %v1092 = vunpack.c.h.b16 %v468
    %v1093 = vunpack.c.l.b16 %v469
    %v1094 = vunpack.c.l.b16 %v470
    %v1095 = vunpack.c.h.b16 %v470
    %v1096 = vunpack.c.l.b16 %v471
    %v1097 = vunpack.c.h.b16 %v471
    %v1098 = vunpack.c.l.b16 %v472
    %v1099 = vunpack.c.l.b16 %v473
    %v1100 = vunpack.c.h.b16 %v473
    %v1101 = vunpack.c.l.b16 %v474
    %v1102 = vunpack.c.h.b16 %v474
    %v1103 = vunpack.c.l.b16 %v475
    %v1104 = vunpack.c.l.b16 %v476
    %v1105 = vunpack.c.h.b16 %v476
    %v1106 = vunpack.c.l.b16 %v477
    %v1107 = vunpack.c.h.b16 %v477
    %v1108 = vunpack.c.l.b16 %v478
    %v1109 = vunpack.c.l.b16 %v479
    %v1110 = vunpack.c.h.b16 %v479
    %v1111 = vunpack.c.l.b16 %v480
    %v1112 = vunpack.c.h.b16 %v480
    %v1113 = vunpack.c.l.b16 %v481
    %v1114 = vunpack.c.l.b16 %v482
    %v1115 = vunpack.c.h.b16 %v482
    %v1116 = vunpack.c.l.b16 %v483
    %v1117 = vunpack.c.h.b16 %v483
    %v1118 = vunpack.c.l.b16 %v484
    %v1119 = vunpack.c.l.b16 %v485
    %v1120 = vunpack.c.h.b16 %v485
    %v1121 = vunpack.c.l.b16 %v486
    %v1122 = vunpack.c.h.b16 %v486
    %v1123 = vunpack.c.l.b16 %v487
    %v1124 = vunpack.c.l.b16 %v488
    %v1125 = vunpack.c.h.b16 %v488
    %v1126 = vunpack.c.l.b16 %v489
    %v1127 = vunpack.c.h.b16 %v489
    %v1128 = vunpack.c.l.b16 %v490
    %v1129 = vunpack.c.l.b16 %v491
    %v1130 = vunpack.c.h.b16 %v491
    %v1131 = vunpack.c.l.b16 %v492
    %v1132 = vunpack.c.h.b16 %v492
    %v1133 = vunpack.c.l.b16 %v493
    %v1134 = vunpack.c.l.b16 %v494
    %v1135 = vunpack.c.h.b16 %v494
    %v1136 = vunpack.c.l.b16 %v495
    %v1137 = vunpack.c.h.b16 %v495
    %v1138 = vunpack.c.l.b16 %v496
    %v1139 = vunpack.c.l.b16 %v497
    %v1140 = vunpack.c.h.b16 %v497
    %v1141 = vunpack.c.l.b16 %v498
    %v1142 = vunpack.c.h.b16 %v498
    %v1143 = vunpack.c.l.b16 %v499
    %v1144 = vunpack.c.l.b16 %v500
    %v1145 = vunpack.c.h.b16 %v500
    %v1146 = vunpack.c.l.b16 %v501
    %v1147 = vunpack.c.h.b16 %v501
    %v1148 = vunpack.c.l.b16 %v502
    %v1149 = vunpack.c.l.b16 %v503
    %v1150 = vunpack.c.h.b16 %v503
    %v1151 = vunpack.c.l.b16 %v504
    %v1152 = vunpack.c.h.b16 %v504
    %v1153 = vunpack.c.l.b16 %v505
    %v1154 = vunpack.c.l.b16 %v506
    %v1155 = vunpack.c.h.b16 %v506
    %v1156 = vunpack.c.l.b16 %v507
    %v1157 = vunpack.c.h.b16 %v507
    %v1158 = vunpack.c.l.b16 %v508
    %v1159 = vunpack.c.l.b16 %v509
    %v1160 = vunpack.c.h.b16 %v509
    %v1161 = vunpack.c.l.b16 %v510
    %v1162 = vunpack.c.h.b16 %v510
    %v1163 = vunpack.c.l.b16 %v511
    %v1164 = vpack.c.b16 %v769, %v764
    %v1165 = vpack.c.b16 %v770, %v765
    %v1166 = vpack.c.b16 %v771, %v766
    %v1167 = vpack.c.b16 %v772, %v767
    %v1168 = vpack.c.b16 %v773, %v768
    %v1169 = vpack.c.b16 %v779, %v774
    %v1170 = vpack.c.b16 %v780, %v775
    %v1171 = vpack.c.b16 %v781, %v776
    %v1172 = vpack.c.b16 %v782, %v777
    %v1173 = vpack.c.b16 %v783, %v778
    %v1174 = vpack.c.b16 %v789, %v784
    %v1175 = vpack.c.b16 %v790, %v785
    %v1176 = vpack.c.b16 %v791, %v786
    %v1177 = vpack.c.b16 %v792, %v787
    %v1178 = vpack.c.b16 %v793, %v788
    %v1179 = vpack.c.b16 %v799, %v794
    %v1180 = vpack.c.b16 %v800, %v795
    %v1181 = vpack.c.b16 %v801, %v796
    %v1182 = vpack.c.b16 %v802, %v797
    %v1183 = vpack.c.b16 %v803, %v798
    %v1184 = vpack.c.b16 %v809, %v804
    %v1185 = vpack.c.b16 %v810, %v805
    %v1186 = vpack.c.b16 %v811, %v806
    %v1187 = vpack.c.b16 %v812, %v807
    %v1188 = vpack.c.b16 %v813, %v808
    %v1189 = vpack.c.b16 %v819, %v814
    %v1190 = vpack.c.b16 %v820, %v815
    %v1191 = vpack.c.b16 %v821, %v816
    %v1192 = vpack.c.b16 %v822, %v817
    %v1193 = vpack.c.b16 %v823, %v818
    %v1194 = vpack.c.b16 %v829, %v824
    %v1195 = vpack.c.b16 %v830, %v825
    %v1196 = vpack.c.b16 %v831, %v826
    %v1197 = vpack.c.b16 %v832, %v827
    %v1198 = vpack.c.b16 %v833, %v828
    %v1199 = vpack.c.b16 %v839, %v834
    %v1200 = vpack.c.b16 %v840, %v835
    %v1201 = vpack.c.b16 %v841, %v836
    %v1202 = vpack.c.b16 %v842, %v837
    %v1203 = vpack.c.b16 %v843, %v838
    %v1204 = vpack.c.b16 %v849, %v844
    %v1205 = vpack.c.b16 %v850, %v845
    %v1206 = vpack.c.b16 %v851, %v846
    %v1207 = vpack.c.b16 %v852, %v847
    %v1208 = vpack.c.b16 %v853, %v848
    %v1209 = vpack.c.b16 %v859, %v854
    %v1210 = vpack.c.b16 %v860, %v855
    %v1211 = vpack.c.b16 %v861, %v856
    %v1212 = vpack.c.b16 %v862, %v857
    %v1213 = vpack.c.b16 %v863, %v858
    %v1214 = vpack.c.b16 %v869, %v864
    %v1215 = vpack.c.b16 %v870, %v865
    %v1216 = vpack.c.b16 %v871, %v866
    %v1217 = vpack.c.b16 %v872, %v867
    %v1218 = vpack.c.b16 %v873, %v868
    %v1219 = vpack.c.b16 %v879, %v874
    %v1220 = vpack.c.b16 %v880, %v875
    %v1221 = vpack.c.b16 %v881, %v876
    %v1222 = vpack.c.b16 %v882, %v877
    %v1223 = vpack.c.b16 %v883, %v878
    %v1224 = vpack.c.b16 %v889, %v884
    %v1225 = vpack.c.b16 %v890, %v885
    %v1226 = vpack.c.b16 %v891, %v886
    %v1227 = vpack.c.b16 %v892, %v887
    %v1228 = vpack.c.b16 %v893, %v888
    %v1229 = vpack.c.b16 %v899, %v894
    %v1230 = vpack.c.b16 %v900, %v895
    %v1231 = vpack.c.b16 %v901, %v896
    %v1232 = vpack.c.b16 %v902, %v897
    %v1233 = vpack.c.b16 %v903, %v898
    %v1234 = vpack.c.b16 %v909, %v904
    %v1235 = vpack.c.b16 %v910, %v905
    %v1236 = vpack.c.b16 %v911, %v906
    %v1237 = vpack.c.b16 %v912, %v907
    %v1238 = vpack.c.b16 %v913, %v908
    %v1239 = vpack.c.b16 %v919, %v914
    %v1240 = vpack.c.b16 %v920, %v915
    %v1241 = vpack.c.b16 %v921, %v916
    %v1242 = vpack.c.b16 %v922, %v917
    %v1243 = vpack.c.b16 %v923, %v918
    %v1244 = vpack.c.b16 %v929, %v924
    %v1245 = vpack.c.b16 %v930, %v925
    %v1246 = vpack.c.b16 %v931, %v926
    %v1247 = vpack.c.b16 %v932, %v927
    %v1248 = vpack.c.b16 %v933, %v928
    %v1249 = vpack.c.b16 %v939, %v934
    %v1250 = vpack.c.b16 %v940, %v935
    %v1251 = vpack.c.b16 %v941, %v936
    %v1252 = vpack.c.b16 %v942, %v937
    %v1253 = vpack.c.b16 %v943, %v938
    %v1254 = vpack.c.b16 %v949, %v944
    %v1255 = vpack.c.b16 %v950, %v945
    %v1256 = vpack.c.b16 %v951, %v946
    %v1257 = vpack.c.b16 %v952, %v947
    %v1258 = vpack.c.b16 %v953, %v948
    %v1259 = vpack.c.b16 %v959, %v954
    %v1260 = vpack.c.b16 %v960, %v955
    %v1261 = vpack.c.b16 %v961, %v956
    %v1262 = vpack.c.b16 %v962, %v957
    %v1263 = vpack.c.b16 %v963, %v958
    %v1264 = vpack.c.b16 %v969, %v964
    %v1265 = vpack.c.b16 %v970, %v965
    %v1266 = vpack.c.b16 %v971, %v966
    %v1267 = vpack.c.b16 %v972, %v967
    %v1268 = vpack.c.b16 %v973, %v968
    %v1269 = vpack.c.b16 %v979, %v974
    %v1270 = vpack.c.b16 %v980, %v975
    %v1271 = vpack.c.b16 %v981, %v976
    %v1272 = vpack.c.b16 %v982, %v977
    %v1273 = vpack.c.b16 %v983, %v978
    %v1274 = vpack.c.b16 %v989, %v984
    %v1275 = vpack.c.b16 %v990, %v985
    %v1276 = vpack.c.b16 %v991, %v986
    %v1277 = vpack.c.b16 %v992, %v987
    %v1278 = vpack.c.b16 %v993, %v988
    %v1279 = vpack.c.b16 %v999, %v994
    %v1280 = vpack.c.b16 %v1000, %v995
    %v1281 = vpack.c.b16 %v1001, %v996
    %v1282 = vpack.c.b16 %v1002, %v997
    %v1283 = vpack.c.b16 %v1003, %v998
    %v1284 = vpack.c.b16 %v1009, %v1004
    %v1285 = vpack.c.b16 %v1010, %v1005
    %v1286 = vpack.c.b16 %v1011, %v1006
    %v1287 = vpack.c.b16 %v1012, %v1007
    %v1288 = vpack.c.b16 %v1013, %v1008
    %v1289 = vpack.c.b16 %v1019, %v1014
    %v1290 = vpack.c.b16 %v1020, %v1015
    %v1291 = vpack.c.b16 %v1021, %v1016
    %v1292 = vpack.c.b16 %v1022, %v1017
    %v1293 = vpack.c.b16 %v1023, %v1018
    %v1294 = vpack.c.b16 %v1029, %v1024
    %v1295 = vpack.c.b16 %v1030, %v1025
    %v1296 = vpack.c.b16 %v1031, %v1026
    %v1297 = vpack.c.b16 %v1032, %v1027
    %v1298 = vpack.c.b16 %v1033, %v1028
    %v1299 = vpack.c.b16 %v1039, %v1034
    %v1300 = vpack.c.b16 %v1040, %v1035
    %v1301 = vpack.c.b16 %v1041, %v1036
    %v1302 = vpack.c.b16 %v1042, %v1037
    %v1303 = vpack.c.b16 %v1043, %v1038
    %v1304 = vpack.c.b16 %v1049, %v1044
    %v1305 = vpack.c.b16 %v1050, %v1045
    %v1306 = vpack.c.b16 %v1051, %v1046
    %v1307 = vpack.c.b16 %v1052, %v1047
    %v1308 = vpack.c.b16 %v1053, %v1048
    %v1309 = vpack.c.b16 %v1059, %v1054
    %v1310 = vpack.c.b16 %v1060, %v1055
    %v1311 = vpack.c.b16 %v1061, %v1056
    %v1312 = vpack.c.b16 %v1062, %v1057
    %v1313 = vpack.c.b16 %v1063, %v1058
    %v1314 = vpack.c.b16 %v1069, %v1064
    %v1315 = vpack.c.b16 %v1070, %v1065
    %v1316 = vpack.c.b16 %v1071, %v1066
    %v1317 = vpack.c.b16 %v1072, %v1067
    %v1318 = vpack.c.b16 %v1073, %v1068
    %v1319 = vpack.c.b16 %v1079, %v1074
    %v1320 = vpack.c.b16 %v1080, %v1075
    %v1321 = vpack.c.b16 %v1081, %v1076
    %v1322 = vpack.c.b16 %v1082, %v1077
    %v1323 = vpack.c.b16 %v1083, %v1078
    %v1324 = vpack.c.b16 %v1089, %v1084
    %v1325 = vpack.c.b16 %v1090, %v1085
    %v1326 = vpack.c.b16 %v1091, %v1086
    %v1327 = vpack.c.b16 %v1092, %v1087
    %v1328 = vpack.c.b16 %v1093, %v1088
    %v1329 = vpack.c.b16 %v1099, %v1094
    %v1330 = vpack.c.b16 %v1100, %v1095
    %v1331 = vpack.c.b16 %v1101, %v1096
    %v1332 = vpack.c.b16 %v1102, %v1097
    %v1333 = vpack.c.b16 %v1103, %v1098
    %v1334 = vpack.c.b16 %v1109, %v1104
    %v1335 = vpack.c.b16 %v1110, %v1105
    %v1336 = vpack.c.b16 %v1111, %v1106
    %v1337 = vpack.c.b16 %v1112, %v1107
    %v1338 = vpack.c.b16 %v1113, %v1108
    %v1339 = vpack.c.b16 %v1119, %v1114
    %v1340 = vpack.c.b16 %v1120, %v1115
    %v1341 = vpack.c.b16 %v1121, %v1116
    %v1342 = vpack.c.b16 %v1122, %v1117
    %v1343 = vpack.c.b16 %v1123, %v1118
    %v1344 = vpack.c.b16 %v1129, %v1124
    %v1345 = vpack.c.b16 %v1130, %v1125
    %v1346 = vpack.c.b16 %v1131, %v1126
    %v1347 = vpack.c.b16 %v1132, %v1127
    %v1348 = vpack.c.b16 %v1133, %v1128
    %v1349 = vpack.c.b16 %v1139, %v1134
    %v1350 = vpack.c.b16 %v1140, %v1135
    %v1351 = vpack.c.b16 %v1141, %v1136
    %v1352 = vpack.c.b16 %v1142, %v1137
    %v1353 = vpack.c.b16 %v1143, %v1138
    %v1354 = vpack.c.b16 %v1149, %v1144
    %v1355 = vpack.c.b16 %v1150, %v1145
    %v1356 = vpack.c.b16 %v1151, %v1146
    %v1357 = vpack.c.b16 %v1152, %v1147
    %v1358 = vpack.c.b16 %v1153, %v1148
    %v1359 = vpack.c.b16 %v1159, %v1154
    %v1360 = vpack.c.b16 %v1160, %v1155
    %v1361 = vpack.c.b16 %v1161, %v1156
    %v1362 = vpack.c.b16 %v1162, %v1157
    %v1363 = vpack.c.b16 %v1163, %v1158
    %1564 = vmatpush.bf16.msra.mxu0 %v1199
    %1565 = vmatpush.bf16.msra.mxu0 %v1194
    %1566 = vmatpush.bf16.msra.mxu0 %v1189
    %1567 = vmatpush.bf16.msra.mxu0 %v1184
    %1568 = vmatpush.bf16.msra.mxu0 %v1179
    %1569 = vmatpush.bf16.msra.mxu0 %v1174
    %1570 = vmatpush.bf16.msra.mxu0 %v1169
    %1571 = vmatpush.bf16.msra.mxu0 %v1164
    %1572 = vmatmul.bf16.gmra.mxu0 %v267
    %v1573 = vpop.f32.mrf.mxu0
    %v1574 = vadd.f32 %v514, %v1573
    %v1575 = vpop.f32.mrf.mxu0
    %1576 = vdwg.mxu0
    %1577 = vmatpush.bf16.msra.mxu0 %v1239
    %1578 = vmatpush.bf16.msra.mxu0 %v1234
    %1579 = vmatpush.bf16.msra.mxu0 %v1229
    %1580 = vmatpush.bf16.msra.mxu0 %v1224
    %1581 = vmatpush.bf16.msra.mxu0 %v1219
    %1582 = vmatpush.bf16.msra.mxu0 %v1214
    %1583 = vmatpush.bf16.msra.mxu0 %v1209
    %1584 = vmatpush.bf16.msra.mxu0 %v1204
    %1585 = vmatmul.bf16.gmra.mxu0 %v268
    %v1586 = vpop.f32.mrf.mxu0
    %v1587 = vadd.f32 %v1574, %v1586
    %v1588 = vpop.f32.mrf.mxu0
    %1589 = vdwg.mxu0
    %1590 = vmatpush.bf16.msra.mxu0 %v1279
    %1591 = vmatpush.bf16.msra.mxu0 %v1274
    %1592 = vmatpush.bf16.msra.mxu0 %v1269
    %1593 = vmatpush.bf16.msra.mxu0 %v1264
    %1594 = vmatpush.bf16.msra.mxu0 %v1259
    %1595 = vmatpush.bf16.msra.mxu0 %v1254
    %1596 = vmatpush.bf16.msra.mxu0 %v1249
    %1597 = vmatpush.bf16.msra.mxu0 %v1244
    %1598 = vmatmul.bf16.gmra.mxu0 %v269
    %v1599 = vpop.f32.mrf.mxu0
    %v1600 = vadd.f32 %v1587, %v1599
    %v1601 = vpop.f32.mrf.mxu0
    %1602 = vdwg.mxu0
    %1603 = vmatpush.bf16.msra.mxu0 %v1319
    %1604 = vmatpush.bf16.msra.mxu0 %v1314
    %1605 = vmatpush.bf16.msra.mxu0 %v1309
    %1606 = vmatpush.bf16.msra.mxu0 %v1304
    %1607 = vmatpush.bf16.msra.mxu0 %v1299
    %1608 = vmatpush.bf16.msra.mxu0 %v1294
    %1609 = vmatpush.bf16.msra.mxu0 %v1289
    %1610 = vmatpush.bf16.msra.mxu0 %v1284
    %1611 = vmatmul.bf16.gmra.mxu0 %v270
    %v1612 = vpop.f32.mrf.mxu0
    %v1613 = vadd.f32 %v1600, %v1612
    %v1614 = vpop.f32.mrf.mxu0
    %1615 = vdwg.mxu0
    %1616 = vmatpush.bf16.msra.mxu0 %v1359
    %1617 = vmatpush.bf16.msra.mxu0 %v1354
    %1618 = vmatpush.bf16.msra.mxu0 %v1349
    %1619 = vmatpush.bf16.msra.mxu0 %v1344
    %1620 = vmatpush.bf16.msra.mxu0 %v1339
    %1621 = vmatpush.bf16.msra.mxu0 %v1334
    %1622 = vmatpush.bf16.msra.mxu0 %v1329
    %1623 = vmatpush.bf16.msra.mxu0 %v1324
    %1624 = vmatmul.bf16.gmra.mxu0 %v271
    %v1625 = vpop.f32.mrf.mxu0
    %v1626 = vadd.f32 %v1613, %v1625
    %v1627 = vpop.f32.mrf.mxu0
    %1628 = vdwg.mxu0
    %1629 = vmatpush.bf16.msra.mxu0 %v1200
    %1630 = vmatpush.bf16.msra.mxu0 %v1195
    %1631 = vmatpush.bf16.msra.mxu0 %v1190
    %1632 = vmatpush.bf16.msra.mxu0 %v1185
    %1633 = vmatpush.bf16.msra.mxu0 %v1180
    %1634 = vmatpush.bf16.msra.mxu0 %v1175
    %1635 = vmatpush.bf16.msra.mxu0 %v1170
    %1636 = vmatpush.bf16.msra.mxu0 %v1165
    %1637 = vmatmul.bf16.gmra.mxu0 %v267
    %v1638 = vpop.f32.mrf.mxu0
    %v1639 = vadd.f32 %v515, %v1638
    %v1640 = vpop.f32.mrf.mxu0
    %1641 = vdwg.mxu0
    %1642 = vmatpush.bf16.msra.mxu0 %v1240
    %1643 = vmatpush.bf16.msra.mxu0 %v1235
    %1644 = vmatpush.bf16.msra.mxu0 %v1230
    %1645 = vmatpush.bf16.msra.mxu0 %v1225
    %1646 = vmatpush.bf16.msra.mxu0 %v1220
    %1647 = vmatpush.bf16.msra.mxu0 %v1215
    %1648 = vmatpush.bf16.msra.mxu0 %v1210
    %1649 = vmatpush.bf16.msra.mxu0 %v1205
    %1650 = vmatmul.bf16.gmra.mxu0 %v268
    %v1651 = vpop.f32.mrf.mxu0
    %v1652 = vadd.f32 %v1639, %v1651
    %v1653 = vpop.f32.mrf.mxu0
    %1654 = vdwg.mxu0
    %1655 = vmatpush.bf16.msra.mxu0 %v1280
    %1656 = vmatpush.bf16.msra.mxu0 %v1275
    %1657 = vmatpush.bf16.msra.mxu0 %v1270
    %1658 = vmatpush.bf16.msra.mxu0 %v1265
    %1659 = vmatpush.bf16.msra.mxu0 %v1260
    %1660 = vmatpush.bf16.msra.mxu0 %v1255
    %1661 = vmatpush.bf16.msra.mxu0 %v1250
    %1662 = vmatpush.bf16.msra.mxu0 %v1245
    %1663 = vmatmul.bf16.gmra.mxu0 %v269
    %v1664 = vpop.f32.mrf.mxu0
    %v1665 = vadd.f32 %v1652, %v1664
    %v1666 = vpop.f32.mrf.mxu0
    %1667 = vdwg.mxu0
    %1668 = vmatpush.bf16.msra.mxu0 %v1320
    %1669 = vmatpush.bf16.msra.mxu0 %v1315
    %1670 = vmatpush.bf16.msra.mxu0 %v1310
    %1671 = vmatpush.bf16.msra.mxu0 %v1305
    %1672 = vmatpush.bf16.msra.mxu0 %v1300
    %1673 = vmatpush.bf16.msra.mxu0 %v1295
    %1674 = vmatpush.bf16.msra.mxu0 %v1290
    %1675 = vmatpush.bf16.msra.mxu0 %v1285
    %1676 = vmatmul.bf16.gmra.mxu0 %v270
    %v1677 = vpop.f32.mrf.mxu0
    %v1678 = vadd.f32 %v1665, %v1677
    %v1679 = vpop.f32.mrf.mxu0
    %1680 = vdwg.mxu0
    %1681 = vmatpush.bf16.msra.mxu0 %v1360
    %1682 = vmatpush.bf16.msra.mxu0 %v1355
    %1683 = vmatpush.bf16.msra.mxu0 %v1350
    %1684 = vmatpush.bf16.msra.mxu0 %v1345
    %1685 = vmatpush.bf16.msra.mxu0 %v1340
    %1686 = vmatpush.bf16.msra.mxu0 %v1335
    %1687 = vmatpush.bf16.msra.mxu0 %v1330
    %1688 = vmatpush.bf16.msra.mxu0 %v1325
    %1689 = vmatmul.bf16.gmra.mxu0 %v271
    %v1690 = vpop.f32.mrf.mxu0
    %v1691 = vadd.f32 %v1678, %v1690
    %v1692 = vpop.f32.mrf.mxu0
    %1693 = vdwg.mxu0
    %1694 = vmatpush.bf16.msra.mxu0 %v1201
    %1695 = vmatpush.bf16.msra.mxu0 %v1196
    %1696 = vmatpush.bf16.msra.mxu0 %v1191
    %1697 = vmatpush.bf16.msra.mxu0 %v1186
    %1698 = vmatpush.bf16.msra.mxu0 %v1181
    %1699 = vmatpush.bf16.msra.mxu0 %v1176
    %1700 = vmatpush.bf16.msra.mxu0 %v1171
    %1701 = vmatpush.bf16.msra.mxu0 %v1166
    %1702 = vmatmul.bf16.gmra.mxu0 %v267
    %v1703 = vpop.f32.mrf.mxu0
    %v1704 = vadd.f32 %v516, %v1703
    %v1705 = vpop.f32.mrf.mxu0
    %1706 = vdwg.mxu0
    %1707 = vmatpush.bf16.msra.mxu0 %v1241
    %1708 = vmatpush.bf16.msra.mxu0 %v1236
    %1709 = vmatpush.bf16.msra.mxu0 %v1231
    %1710 = vmatpush.bf16.msra.mxu0 %v1226
    %1711 = vmatpush.bf16.msra.mxu0 %v1221
    %1712 = vmatpush.bf16.msra.mxu0 %v1216
    %1713 = vmatpush.bf16.msra.mxu0 %v1211
    %1714 = vmatpush.bf16.msra.mxu0 %v1206
    %1715 = vmatmul.bf16.gmra.mxu0 %v268
    %v1716 = vpop.f32.mrf.mxu0
    %v1717 = vadd.f32 %v1704, %v1716
    %v1718 = vpop.f32.mrf.mxu0
    %1719 = vdwg.mxu0
    %1720 = vmatpush.bf16.msra.mxu0 %v1281
    %1721 = vmatpush.bf16.msra.mxu0 %v1276
    %1722 = vmatpush.bf16.msra.mxu0 %v1271
    %1723 = vmatpush.bf16.msra.mxu0 %v1266
    %1724 = vmatpush.bf16.msra.mxu0 %v1261
    %1725 = vmatpush.bf16.msra.mxu0 %v1256
    %1726 = vmatpush.bf16.msra.mxu0 %v1251
    %1727 = vmatpush.bf16.msra.mxu0 %v1246
    %1728 = vmatmul.bf16.gmra.mxu0 %v269
    %v1729 = vpop.f32.mrf.mxu0
    %v1730 = vadd.f32 %v1717, %v1729
    %v1731 = vpop.f32.mrf.mxu0
    %1732 = vdwg.mxu0
    %1733 = vmatpush.bf16.msra.mxu0 %v1321
    %1734 = vmatpush.bf16.msra.mxu0 %v1316
    %1735 = vmatpush.bf16.msra.mxu0 %v1311
    %1736 = vmatpush.bf16.msra.mxu0 %v1306
    %1737 = vmatpush.bf16.msra.mxu0 %v1301
    %1738 = vmatpush.bf16.msra.mxu0 %v1296
    %1739 = vmatpush.bf16.msra.mxu0 %v1291
    %1740 = vmatpush.bf16.msra.mxu0 %v1286
    %1741 = vmatmul.bf16.gmra.mxu0 %v270
    %v1742 = vpop.f32.mrf.mxu0
    %v1743 = vadd.f32 %v1730, %v1742
    %v1744 = vpop.f32.mrf.mxu0
    %1745 = vdwg.mxu0
    %1746 = vmatpush.bf16.msra.mxu0 %v1361
    %1747 = vmatpush.bf16.msra.mxu0 %v1356
    %1748 = vmatpush.bf16.msra.mxu0 %v1351
    %1749 = vmatpush.bf16.msra.mxu0 %v1346
    %1750 = vmatpush.bf16.msra.mxu0 %v1341
    %1751 = vmatpush.bf16.msra.mxu0 %v1336
    %1752 = vmatpush.bf16.msra.mxu0 %v1331
    %1753 = vmatpush.bf16.msra.mxu0 %v1326
    %1754 = vmatmul.bf16.gmra.mxu0 %v271
    %v1755 = vpop.f32.mrf.mxu0
    %v1756 = vadd.f32 %v1743, %v1755
    %v1757 = vpop.f32.mrf.mxu0
    %1758 = vdwg.mxu0
    %1759 = vmatpush.bf16.msra.mxu0 %v1202
    %1760 = vmatpush.bf16.msra.mxu0 %v1197
    %1761 = vmatpush.bf16.msra.mxu0 %v1192
    %1762 = vmatpush.bf16.msra.mxu0 %v1187
    %1763 = vmatpush.bf16.msra.mxu0 %v1182
    %1764 = vmatpush.bf16.msra.mxu0 %v1177
    %1765 = vmatpush.bf16.msra.mxu0 %v1172
    %1766 = vmatpush.bf16.msra.mxu0 %v1167
    %1767 = vmatmul.bf16.gmra.mxu0 %v267
    %v1768 = vpop.f32.mrf.mxu0
    %v1769 = vadd.f32 %v517, %v1768
    %v1770 = vpop.f32.mrf.mxu0
    %1771 = vdwg.mxu0
    %1772 = vmatpush.bf16.msra.mxu0 %v1242
    %1773 = vmatpush.bf16.msra.mxu0 %v1237
    %1774 = vmatpush.bf16.msra.mxu0 %v1232
    %1775 = vmatpush.bf16.msra.mxu0 %v1227
    %1776 = vmatpush.bf16.msra.mxu0 %v1222
    %1777 = vmatpush.bf16.msra.mxu0 %v1217
    %1778 = vmatpush.bf16.msra.mxu0 %v1212
    %1779 = vmatpush.bf16.msra.mxu0 %v1207
    %1780 = vmatmul.bf16.gmra.mxu0 %v268
    %v1781 = vpop.f32.mrf.mxu0
    %v1782 = vadd.f32 %v1769, %v1781
    %v1783 = vpop.f32.mrf.mxu0
    %1784 = vdwg.mxu0
    %1785 = vmatpush.bf16.msra.mxu0 %v1282
    %1786 = vmatpush.bf16.msra.mxu0 %v1277
    %1787 = vmatpush.bf16.msra.mxu0 %v1272
    %1788 = vmatpush.bf16.msra.mxu0 %v1267
    %1789 = vmatpush.bf16.msra.mxu0 %v1262
    %1790 = vmatpush.bf16.msra.mxu0 %v1257
    %1791 = vmatpush.bf16.msra.mxu0 %v1252
    %1792 = vmatpush.bf16.msra.mxu0 %v1247
    %1793 = vmatmul.bf16.gmra.mxu0 %v269
    %v1794 = vpop.f32.mrf.mxu0
    %v1795 = vadd.f32 %v1782, %v1794
    %v1796 = vpop.f32.mrf.mxu0
    %1797 = vdwg.mxu0
    %1798 = vmatpush.bf16.msra.mxu0 %v1322
    %1799 = vmatpush.bf16.msra.mxu0 %v1317
    %1800 = vmatpush.bf16.msra.mxu0 %v1312
    %1801 = vmatpush.bf16.msra.mxu0 %v1307
    %1802 = vmatpush.bf16.msra.mxu0 %v1302
    %1803 = vmatpush.bf16.msra.mxu0 %v1297
    %1804 = vmatpush.bf16.msra.mxu0 %v1292
    %1805 = vmatpush.bf16.msra.mxu0 %v1287
    %1806 = vmatmul.bf16.gmra.mxu0 %v270
    %v1807 = vpop.f32.mrf.mxu0
    %v1808 = vadd.f32 %v1795, %v1807
    %v1809 = vpop.f32.mrf.mxu0
    %1810 = vdwg.mxu0
    %1811 = vmatpush.bf16.msra.mxu0 %v1362
    %1812 = vmatpush.bf16.msra.mxu0 %v1357
    %1813 = vmatpush.bf16.msra.mxu0 %v1352
    %1814 = vmatpush.bf16.msra.mxu0 %v1347
    %1815 = vmatpush.bf16.msra.mxu0 %v1342
    %1816 = vmatpush.bf16.msra.mxu0 %v1337
    %1817 = vmatpush.bf16.msra.mxu0 %v1332
    %1818 = vmatpush.bf16.msra.mxu0 %v1327
    %1819 = vmatmul.bf16.gmra.mxu0 %v271
    %v1820 = vpop.f32.mrf.mxu0
    %v1821 = vadd.f32 %v1808, %v1820
    %v1822 = vpop.f32.mrf.mxu0
    %1823 = vdwg.mxu0
    %1824 = vmatpush.bf16.msra.mxu0 %v1203
    %1825 = vmatpush.bf16.msra.mxu0 %v1198
    %1826 = vmatpush.bf16.msra.mxu0 %v1193
    %1827 = vmatpush.bf16.msra.mxu0 %v1188
    %1828 = vmatpush.bf16.msra.mxu0 %v1183
    %1829 = vmatpush.bf16.msra.mxu0 %v1178
    %1830 = vmatpush.bf16.msra.mxu0 %v1173
    %1831 = vmatpush.bf16.msra.mxu0 %v1168
    %1832 = vmatmul.bf16.gmra.mxu0 %v267
    %v1833 = vpop.f32.mrf.mxu0
    %v1834 = vadd.f32 %v518, %v1833
    %v1835 = vpop.f32.mrf.mxu0
    %1836 = vdwg.mxu0
    %1837 = vmatpush.bf16.msra.mxu0 %v1243
    %1838 = vmatpush.bf16.msra.mxu0 %v1238
    %1839 = vmatpush.bf16.msra.mxu0 %v1233
    %1840 = vmatpush.bf16.msra.mxu0 %v1228
    %1841 = vmatpush.bf16.msra.mxu0 %v1223
    %1842 = vmatpush.bf16.msra.mxu0 %v1218
    %1843 = vmatpush.bf16.msra.mxu0 %v1213
    %1844 = vmatpush.bf16.msra.mxu0 %v1208
    %1845 = vmatmul.bf16.gmra.mxu0 %v268
    %v1846 = vpop.f32.mrf.mxu0
    %v1847 = vadd.f32 %v1834, %v1846
    %v1848 = vpop.f32.mrf.mxu0
    %1849 = vdwg.mxu0
    %1850 = vmatpush.bf16.msra.mxu0 %v1283
    %1851 = vmatpush.bf16.msra.mxu0 %v1278
    %1852 = vmatpush.bf16.msra.mxu0 %v1273
    %1853 = vmatpush.bf16.msra.mxu0 %v1268
    %1854 = vmatpush.bf16.msra.mxu0 %v1263
    %1855 = vmatpush.bf16.msra.mxu0 %v1258
    %1856 = vmatpush.bf16.msra.mxu0 %v1253
    %1857 = vmatpush.bf16.msra.mxu0 %v1248
    %1858 = vmatmul.bf16.gmra.mxu0 %v269
    %v1859 = vpop.f32.mrf.mxu0
    %v1860 = vadd.f32 %v1847, %v1859
    %v1861 = vpop.f32.mrf.mxu0
    %1862 = vdwg.mxu0
    %1863 = vmatpush.bf16.msra.mxu0 %v1323
    %1864 = vmatpush.bf16.msra.mxu0 %v1318
    %1865 = vmatpush.bf16.msra.mxu0 %v1313
    %1866 = vmatpush.bf16.msra.mxu0 %v1308
    %1867 = vmatpush.bf16.msra.mxu0 %v1303
    %1868 = vmatpush.bf16.msra.mxu0 %v1298
    %1869 = vmatpush.bf16.msra.mxu0 %v1293
    %1870 = vmatpush.bf16.msra.mxu0 %v1288
    %1871 = vmatmul.bf16.gmra.mxu0 %v270
    %v1872 = vpop.f32.mrf.mxu0
    %v1873 = vadd.f32 %v1860, %v1872
    %v1874 = vpop.f32.mrf.mxu0
    %1875 = vdwg.mxu0
    %1876 = vmatpush.bf16.msra.mxu0 %v1363
    %1877 = vmatpush.bf16.msra.mxu0 %v1358
    %1878 = vmatpush.bf16.msra.mxu0 %v1353
    %1879 = vmatpush.bf16.msra.mxu0 %v1348
    %1880 = vmatpush.bf16.msra.mxu0 %v1343
    %1881 = vmatpush.bf16.msra.mxu0 %v1338
    %1882 = vmatpush.bf16.msra.mxu0 %v1333
    %1883 = vmatpush.bf16.msra.mxu0 %v1328
    %1884 = vmatmul.bf16.gmra.mxu0 %v271
    %v1885 = vpop.f32.mrf.mxu0
    %v1886 = vadd.f32 %v1873, %v1885
    %v1887 = vpop.f32.mrf.mxu0
    %1888 = vdwg.mxu0
    %v1889 = vmax.f32 %v1626, 0.0
    %v1890 = vmax.f32 %v1691, 0.0
    %v1891 = vmax.f32 %v1756, 0.0
    %v1892 = vmax.f32 %v1821, 0.0
    %v1893 = vmax.f32 %v1886, 0.0
    %v1894 = vpack.c.bf16 %v1889, %v1889
    %v1895 = vpack.c.bf16 %v1890, %v1890
    %v1896 = vpack.c.bf16 %v1891, %v1891
    %v1897 = vpack.c.bf16 %v1892, %v1892
    %v1898 = vpack.c.bf16 %v1893, %v1893
    %v1899 = vld [vmem:[#allocation11] sm:$0xf]
    %v1900 = vld [vmem:[#allocation11 + $0x4] sm:$0xf]
    %v1901 = vld [vmem:[#allocation11 + $0x8] sm:$0xf]
    %v1902 = vld [vmem:[#allocation11 + $0xc] sm:$0xf]
    %v1903 = vld [vmem:[#allocation11 + $0x10] sm:$0xf]
    %v1904 = vld [vmem:[#allocation11 + $0x14] sm:$0xf]
    %v1905 = vld [vmem:[#allocation11 + $0x18] sm:$0xf]
    %v1906 = vld [vmem:[#allocation11 + $0x1c] sm:$0xf]
    %v1907 = vld [vmem:[#allocation11 + $0x20] sm:$0xf]
    %v1908 = vld [vmem:[#allocation11 + $0x24] sm:$0xf]
    %v1909 = vld [vmem:[#allocation11 + $0x28] sm:$0xf]
    %v1910 = vld [vmem:[#allocation11 + $0x2c] sm:$0xf]
    %v1911 = vld [vmem:[#allocation11 + $0x30] sm:$0xf]
    %v1912 = vld [vmem:[#allocation11 + $0x34] sm:$0xf]
    %v1913 = vld [vmem:[#allocation11 + $0x38] sm:$0xf]
    %v1914 = vld [vmem:[#allocation11 + $0x3c] sm:$0xf]
    %v1915 = vld [vmem:[#allocation11 + $0x40] sm:$0xf]
    %v1916 = vld [vmem:[#allocation11 + $0x44] sm:$0xf]
    %v1917 = vld [vmem:[#allocation11 + $0x48] sm:$0xf]
    %v1918 = vld [vmem:[#allocation11 + $0x4c] sm:$0xf]
    %v1919 = vld [vmem:[#allocation11 + $0x50] sm:$0xf]
    %v1920 = vld [vmem:[#allocation11 + $0x54] sm:$0xf]
    %v1921 = vld [vmem:[#allocation11 + $0x58] sm:$0xf]
    %v1922 = vld [vmem:[#allocation11 + $0x5c] sm:$0xf]
    %v1923 = vld [vmem:[#allocation11 + $0x60] sm:$0xf]
    %v1924 = vld [vmem:[#allocation11 + $0x64] sm:$0xf]
    %v1925 = vld [vmem:[#allocation11 + $0x68] sm:$0xf]
    %v1926 = vld [vmem:[#allocation11 + $0x6c] sm:$0xf]
    %v1927 = vld [vmem:[#allocation11 + $0x70] sm:$0xf]
    %v1928 = vld [vmem:[#allocation11 + $0x74] sm:$0xf]
    %v1929 = vld [vmem:[#allocation11 + $0x78] sm:$0xf]
    %v1930 = vld [vmem:[#allocation11 + $0x7c] sm:$0xf]
    %v1931 = vld [vmem:[#allocation11 + $0x80] sm:$0xf]
    %v1932 = vld [vmem:[#allocation11 + $0x84] sm:$0xf]
    %v1933 = vld [vmem:[#allocation11 + $0x88] sm:$0xf]
    %v1934 = vld [vmem:[#allocation11 + $0x8c] sm:$0xf]
    %v1935 = vld [vmem:[#allocation11 + $0x90] sm:$0xf]
    %v1936 = vld [vmem:[#allocation11 + $0x94] sm:$0xf]
    %v1937 = vld [vmem:[#allocation11 + $0x98] sm:$0xf]
    %v1938 = vld [vmem:[#allocation11 + $0x9c] sm:$0xf]
    %v1939 = vld [vmem:[#allocation11 + $0xa0] sm:$0xf]
    %v1940 = vld [vmem:[#allocation11 + $0xa4] sm:$0xf]
    %v1941 = vld [vmem:[#allocation11 + $0xa8] sm:$0xf]
    %v1942 = vld [vmem:[#allocation11 + $0xac] sm:$0xf]
    %v1943 = vld [vmem:[#allocation11 + $0xb0] sm:$0xf]
    %v1944 = vld [vmem:[#allocation11 + $0xb4] sm:$0xf]
    %v1945 = vld [vmem:[#allocation11 + $0xb8] sm:$0xf]
    %v1946 = vld [vmem:[#allocation11 + $0xbc] sm:$0xf]
    %v1947 = vld [vmem:[#allocation11 + $0xc0] sm:$0xf]
    %v1948 = vld [vmem:[#allocation11 + $0xc4] sm:$0xf]
    %v1949 = vld [vmem:[#allocation11 + $0xc8] sm:$0xf]
    %v1950 = vld [vmem:[#allocation11 + $0xcc] sm:$0xf]
    %v1951 = vld [vmem:[#allocation11 + $0xd0] sm:$0xf]
    %v1952 = vld [vmem:[#allocation11 + $0xd4] sm:$0xf]
    %v1953 = vld [vmem:[#allocation11 + $0xd8] sm:$0xf]
    %v1954 = vld [vmem:[#allocation11 + $0xdc] sm:$0xf]
    %v1955 = vld [vmem:[#allocation11 + $0xe0] sm:$0xf]
    %v1956 = vld [vmem:[#allocation11 + $0xe4] sm:$0xf]
    %v1957 = vld [vmem:[#allocation11 + $0xe8] sm:$0xf]
    %v1958 = vld [vmem:[#allocation11 + $0xec] sm:$0xf]
    %v1959 = vld [vmem:[#allocation11 + $0xf0] sm:$0xf]
    %v1960 = vld [vmem:[#allocation11 + $0xf4] sm:$0xf]
    %v1961 = vld [vmem:[#allocation11 + $0xf8] sm:$0xf]
    %v1962 = vld [vmem:[#allocation11 + $0xfc] sm:$0xf]
    %v1963 = vld [vmem:[#allocation11 + $0x100] sm:$0xf]
    %v1964 = vld [vmem:[#allocation11 + $0x104] sm:$0xf]
    %v1965 = vld [vmem:[#allocation11 + $0x108] sm:$0xf]
    %v1966 = vld [vmem:[#allocation11 + $0x10c] sm:$0xf]
    %v1967 = vld [vmem:[#allocation11 + $0x110] sm:$0xf]
    %v1968 = vld [vmem:[#allocation11 + $0x114] sm:$0xf]
    %v1969 = vld [vmem:[#allocation11 + $0x118] sm:$0xf]
    %v1970 = vld [vmem:[#allocation11 + $0x11c] sm:$0xf]
    %v1971 = vld [vmem:[#allocation11 + $0x120] sm:$0xf]
    %v1972 = vld [vmem:[#allocation11 + $0x124] sm:$0xf]
    %v1973 = vld [vmem:[#allocation11 + $0x128] sm:$0xf]
    %v1974 = vld [vmem:[#allocation11 + $0x12c] sm:$0xf]
    %v1975 = vld [vmem:[#allocation11 + $0x130] sm:$0xf]
    %v1976 = vld [vmem:[#allocation11 + $0x134] sm:$0xf]
    %v1977 = vld [vmem:[#allocation11 + $0x138] sm:$0xf]
    %v1978 = vld [vmem:[#allocation11 + $0x13c] sm:$0xf]
    %v1979 = vld [vmem:[%s6] sm:$0x1]
    %v1981 = vperm.slane %v1979, 0
    %v2063 = vunpack.c.l.b16 %v1899
    %v2064 = vunpack.c.l.b16 %v1900
    %v2065 = vunpack.c.l.b16 %v1901
    %v2066 = vunpack.c.l.b16 %v1902
    %v2067 = vunpack.c.l.b16 %v1903
    %v2068 = vunpack.c.l.b16 %v1904
    %v2069 = vunpack.c.l.b16 %v1905
    %v2070 = vunpack.c.l.b16 %v1906
    %v2071 = vunpack.c.l.b16 %v1907
    %v2072 = vunpack.c.l.b16 %v1908
    %v2073 = vunpack.c.l.b16 %v1909
    %v2074 = vunpack.c.l.b16 %v1910
    %v2075 = vunpack.c.l.b16 %v1911
    %v2076 = vunpack.c.l.b16 %v1912
    %v2077 = vunpack.c.l.b16 %v1913
    %v2078 = vunpack.c.l.b16 %v1914
    %v2079 = vunpack.c.l.b16 %v1915
    %v2080 = vunpack.c.l.b16 %v1916
    %v2081 = vunpack.c.l.b16 %v1917
    %v2082 = vunpack.c.l.b16 %v1918
    %v2083 = vunpack.c.l.b16 %v1919
    %v2084 = vunpack.c.l.b16 %v1920
    %v2085 = vunpack.c.l.b16 %v1921
    %v2086 = vunpack.c.l.b16 %v1922
    %v2087 = vunpack.c.l.b16 %v1923
    %v2088 = vunpack.c.l.b16 %v1924
    %v2089 = vunpack.c.l.b16 %v1925
    %v2090 = vunpack.c.l.b16 %v1926
    %v2091 = vunpack.c.l.b16 %v1927
    %v2092 = vunpack.c.l.b16 %v1928
    %v2093 = vunpack.c.l.b16 %v1929
    %v2094 = vunpack.c.l.b16 %v1930
    %v2095 = vunpack.c.l.b16 %v1931
    %v2096 = vunpack.c.l.b16 %v1932
    %v2097 = vunpack.c.l.b16 %v1933
    %v2098 = vunpack.c.l.b16 %v1934
    %v2099 = vunpack.c.l.b16 %v1935
    %v2100 = vunpack.c.l.b16 %v1936
    %v2101 = vunpack.c.l.b16 %v1937
    %v2102 = vunpack.c.l.b16 %v1938
    %v2103 = vunpack.c.l.b16 %v1939
    %v2104 = vunpack.c.l.b16 %v1940
    %v2105 = vunpack.c.l.b16 %v1941
    %v2106 = vunpack.c.l.b16 %v1942
    %v2107 = vunpack.c.l.b16 %v1943
    %v2108 = vunpack.c.l.b16 %v1944
    %v2109 = vunpack.c.l.b16 %v1945
    %v2110 = vunpack.c.l.b16 %v1946
    %v2111 = vunpack.c.l.b16 %v1947
    %v2112 = vunpack.c.l.b16 %v1948
    %v2113 = vunpack.c.l.b16 %v1949
    %v2114 = vunpack.c.l.b16 %v1950
    %v2115 = vunpack.c.l.b16 %v1951
    %v2116 = vunpack.c.l.b16 %v1952
    %v2117 = vunpack.c.l.b16 %v1953
    %v2118 = vunpack.c.l.b16 %v1954
    %v2119 = vunpack.c.l.b16 %v1955
    %v2120 = vunpack.c.l.b16 %v1956
    %v2121 = vunpack.c.l.b16 %v1957
    %v2122 = vunpack.c.l.b16 %v1958
    %v2123 = vunpack.c.l.b16 %v1959
    %v2124 = vunpack.c.l.b16 %v1960
    %v2125 = vunpack.c.l.b16 %v1961
    %v2126 = vunpack.c.l.b16 %v1962
    %v2127 = vunpack.c.l.b16 %v1963
    %v2128 = vunpack.c.l.b16 %v1964
    %v2129 = vunpack.c.l.b16 %v1965
    %v2130 = vunpack.c.l.b16 %v1966
    %v2131 = vunpack.c.l.b16 %v1967
    %v2132 = vunpack.c.l.b16 %v1968
    %v2133 = vunpack.c.l.b16 %v1969
    %v2134 = vunpack.c.l.b16 %v1970
    %v2135 = vunpack.c.l.b16 %v1971
    %v2136 = vunpack.c.l.b16 %v1972
    %v2137 = vunpack.c.l.b16 %v1973
    %v2138 = vunpack.c.l.b16 %v1974
    %v2139 = vunpack.c.l.b16 %v1975
    %v2140 = vunpack.c.l.b16 %v1976
    %v2141 = vunpack.c.l.b16 %v1977
    %v2142 = vunpack.c.l.b16 %v1978
    %v2143 = vpack.c.b16 %v2064, %v2063
    %v2144 = vpack.c.b16 %v2066, %v2065
    %v2145 = vpack.c.b16 %v2068, %v2067
    %v2146 = vpack.c.b16 %v2070, %v2069
    %v2147 = vpack.c.b16 %v2072, %v2071
    %v2148 = vpack.c.b16 %v2074, %v2073
    %v2149 = vpack.c.b16 %v2076, %v2075
    %v2150 = vpack.c.b16 %v2078, %v2077
    %v2151 = vpack.c.b16 %v2080, %v2079
    %v2152 = vpack.c.b16 %v2082, %v2081
    %v2153 = vpack.c.b16 %v2084, %v2083
    %v2154 = vpack.c.b16 %v2086, %v2085
    %v2155 = vpack.c.b16 %v2088, %v2087
    %v2156 = vpack.c.b16 %v2090, %v2089
    %v2157 = vpack.c.b16 %v2092, %v2091
    %v2158 = vpack.c.b16 %v2094, %v2093
    %v2159 = vpack.c.b16 %v2096, %v2095
    %v2160 = vpack.c.b16 %v2098, %v2097
    %v2161 = vpack.c.b16 %v2100, %v2099
    %v2162 = vpack.c.b16 %v2102, %v2101
    %v2163 = vpack.c.b16 %v2104, %v2103
    %v2164 = vpack.c.b16 %v2106, %v2105
    %v2165 = vpack.c.b16 %v2108, %v2107
    %v2166 = vpack.c.b16 %v2110, %v2109
    %v2167 = vpack.c.b16 %v2112, %v2111
    %v2168 = vpack.c.b16 %v2114, %v2113
    %v2169 = vpack.c.b16 %v2116, %v2115
    %v2170 = vpack.c.b16 %v2118, %v2117
    %v2171 = vpack.c.b16 %v2120, %v2119
    %v2172 = vpack.c.b16 %v2122, %v2121
    %v2173 = vpack.c.b16 %v2124, %v2123
    %v2174 = vpack.c.b16 %v2126, %v2125
    %v2175 = vpack.c.b16 %v2128, %v2127
    %v2176 = vpack.c.b16 %v2130, %v2129
    %v2177 = vpack.c.b16 %v2132, %v2131
    %v2178 = vpack.c.b16 %v2134, %v2133
    %v2179 = vpack.c.b16 %v2136, %v2135
    %v2180 = vpack.c.b16 %v2138, %v2137
    %v2181 = vpack.c.b16 %v2140, %v2139
    %v2182 = vpack.c.b16 %v2142, %v2141
    %2223 = vmatpush.bf16.msra.mxu0 %v2150
    %2224 = vmatpush.bf16.msra.mxu0 %v2149
    %2225 = vmatpush.bf16.msra.mxu0 %v2148
    %2226 = vmatpush.bf16.msra.mxu0 %v2147
    %2227 = vmatpush.bf16.msra.mxu0 %v2146
    %2228 = vmatpush.bf16.msra.mxu0 %v2145
    %2229 = vmatpush.bf16.msra.mxu0 %v2144
    %2230 = vmatpush.bf16.msra.mxu0 %v2143
    %2231 = vmatmul.bf16.gmra.mxu0 %v1894
    %v2232 = vpop.f32.mrf.mxu0
    %v2233 = vadd.f32 %v1981, %v2232
    %v2234 = vpop.f32.mrf.mxu0
    %2235 = vdwg.mxu0
    %2236 = vmatpush.bf16.msra.mxu0 %v2158
    %2237 = vmatpush.bf16.msra.mxu0 %v2157
    %2238 = vmatpush.bf16.msra.mxu0 %v2156
    %2239 = vmatpush.bf16.msra.mxu0 %v2155
    %2240 = vmatpush.bf16.msra.mxu0 %v2154
    %2241 = vmatpush.bf16.msra.mxu0 %v2153
    %2242 = vmatpush.bf16.msra.mxu0 %v2152
    %2243 = vmatpush.bf16.msra.mxu0 %v2151
    %2244 = vmatmul.bf16.gmra.mxu0 %v1895
    %v2245 = vpop.f32.mrf.mxu0
    %v2246 = vadd.f32 %v2233, %v2245
    %v2247 = vpop.f32.mrf.mxu0
    %2248 = vdwg.mxu0
    %2249 = vmatpush.bf16.msra.mxu0 %v2166
    %2250 = vmatpush.bf16.msra.mxu0 %v2165
    %2251 = vmatpush.bf16.msra.mxu0 %v2164
    %2252 = vmatpush.bf16.msra.mxu0 %v2163
    %2253 = vmatpush.bf16.msra.mxu0 %v2162
    %2254 = vmatpush.bf16.msra.mxu0 %v2161
    %2255 = vmatpush.bf16.msra.mxu0 %v2160
    %2256 = vmatpush.bf16.msra.mxu0 %v2159
    %2257 = vmatmul.bf16.gmra.mxu0 %v1896
    %v2258 = vpop.f32.mrf.mxu0
    %v2259 = vadd.f32 %v2246, %v2258
    %v2260 = vpop.f32.mrf.mxu0
    %2261 = vdwg.mxu0
    %2262 = vmatpush.bf16.msra.mxu0 %v2174
    %2263 = vmatpush.bf16.msra.mxu0 %v2173
    %2264 = vmatpush.bf16.msra.mxu0 %v2172
    %2265 = vmatpush.bf16.msra.mxu0 %v2171
    %2266 = vmatpush.bf16.msra.mxu0 %v2170
    %2267 = vmatpush.bf16.msra.mxu0 %v2169
    %2268 = vmatpush.bf16.msra.mxu0 %v2168
    %2269 = vmatpush.bf16.msra.mxu0 %v2167
    %2270 = vmatmul.bf16.gmra.mxu0 %v1897
    %v2271 = vpop.f32.mrf.mxu0
    %v2272 = vadd.f32 %v2259, %v2271
    %v2273 = vpop.f32.mrf.mxu0
    %2274 = vdwg.mxu0
    %2275 = vmatpush.bf16.msra.mxu0 %v2182
    %2276 = vmatpush.bf16.msra.mxu0 %v2181
    %2277 = vmatpush.bf16.msra.mxu0 %v2180
    %2278 = vmatpush.bf16.msra.mxu0 %v2179
    %2279 = vmatpush.bf16.msra.mxu0 %v2178
    %2280 = vmatpush.bf16.msra.mxu0 %v2177
    %2281 = vmatpush.bf16.msra.mxu0 %v2176
    %2282 = vmatpush.bf16.msra.mxu0 %v2175
    %2283 = vmatmul.bf16.gmra.mxu0 %v1898
    %v2284 = vpop.f32.mrf.mxu0
    %v2285 = vadd.f32 %v2272, %v2284
    %v2286 = vpop.f32.mrf.mxu0
    %2287 = vdwg.mxu0
    %2288 = vst [vmem:[#allocation13] sm:$0x3] %v2285
    // Predicated region
    $region54: #{tpu_custom_call.1} parent=1 // pred_check
      _
    $region55: #{tpu_custom_call.1} parent=1 // pred_check_branch
      %2290 = sbr.rel (0) target = $region57
    $region56: #{tpu_custom_call.1} parent=1 // pred_region
      %2292 = vsyncadd [#allocation4], 0
      %s2294 = sshll.u32 [#allocation13], 4
      %s2295 = int_to_ptr.vmem [resolvable:$true] %s2294
      %s2296 = sshll.u32 %s7, 4
      %s2297 = int_to_ptr.hbm [resolvable:$true] %s2296
      %2299 = dma.vmem_to_hbm [thread:$0]  %s2295, 32, %s2297, [#allocation4]
    $region57: #{tpu_custom_call.1} parent=1 // pred_fallthru
      _
    // Predicated region
    $region58: #{tpu_custom_call.1} parent=1 // pred_check
      _
    $region59: #{tpu_custom_call.1} parent=1 // pred_check_branch
      %2301 = sbr.rel (0) target = $region61
    $region60: #{tpu_custom_call.1} parent=1 // pred_region
      %2303 = dma.done [#allocation4], 32
    $region61: #{tpu_custom_call.1} parent=1 // pred_fallthru
      _
    %2304 = vsyncpa [#allocation3], 1
    %2305 = vsyncpa [#allocation6], 1
    %2306 = vsyncpa [#allocation9], 1
    %2307 = vsyncpa [#allocation12], 1
    %2308 = vsyncpa [#allocation4], 1

</llo_original>
